<compile_context>
chip_gen: v5e
topology: v5e:2x2
jax: 0.10.0
libtpu: 0.0.40
codegen_flags: <defaults>
</compile_context>

<pallas_src>
import functools

import jax
import jax.numpy as jnp
import numpy as np
from jax.experimental import pallas as pl
from jax.experimental.pallas import tpu as pltpu


def seq2seq_kernel(src_ref, enc_wih_ref, enc_whh_ref, enc_b_ref,
                   dec_wih_ref, dec_whh_ref, dec_b_ref,
                   fc_w_ref, fc_b_ref, out_ref, *, batch, src_len, out_len):
    """Fused encoder + autoregressive decoder.  No grid: invoked exactly once.

    src_ref:  (S*B, D_in)   time-major flattened source (row t*B + b), B padded to 8
    enc_*:    encoder LSTM weights  (D_in, 4H), (H, 4H), (1, 4H)   gate order i,f,o,g
    dec_*:    decoder LSTM weights  (out_dim, 4H), (H, 4H), (1, 4H) gate order i,f,o,g
    fc_*:     decoder linear head   (H, out_dim), (1, out_dim)
    out_ref:  (T*B, out_dim)  time-major flattened output
    """
    B = batch
    H = enc_whh_ref.shape[0]
    f32 = jnp.float32

    def lstm_cell(gates, c):
        # Gate order i, f, o, g: one sigmoid over 3H lanes + one tanh over H.
        sig = jax.nn.sigmoid(gates[:, :3 * H])
        i = sig[:, 0 * H:1 * H]
        f = sig[:, 1 * H:2 * H]
        o = sig[:, 2 * H:3 * H]
        g = jnp.tanh(gates[:, 3 * H:])
        c_new = f * c + i * g
        h_new = o * jnp.tanh(c_new)
        return h_new, c_new

    # ---- Encoder -----------------------------------------------------------
    # Input projection for all timesteps as one batched matmul (bias folded),
    # off the serial critical path.  Row t*B + b holds x_t[b] @ W_ih + b_enc.
    gates_pre = (jnp.dot(src_ref[...], enc_wih_ref[...],
                         preferred_element_type=f32)
                 + enc_b_ref[...])                               # (S*B, 4H)
    enc_whh = enc_whh_ref[...]

    h = jnp.zeros((B, H), f32)
    c = jnp.zeros((B, H), f32)
    for t in range(src_len):                                     # fully unrolled
        # B is padded to 8, so this slice is a tile-aligned (8, 4H) view.
        gates = gates_pre[t * B:(t + 1) * B, :] + jnp.dot(
            h, enc_whh, preferred_element_type=f32)
        h, c = lstm_cell(gates, c)

    # ---- Decoder (FC folded into the recurrence) ---------------------------
    dec_wih = dec_wih_ref[...]
    dec_whh = dec_whh_ref[...]
    fc_w = fc_w_ref[...]
    w_comb = dec_whh + jnp.dot(fc_w, dec_wih, preferred_element_type=f32)

    # Bias broadcasts hoisted out of the time loop.
    b0 = jnp.broadcast_to(dec_b_ref[...], (B, 4 * H))
    b_comb = jnp.broadcast_to(
        dec_b_ref[...] + jnp.dot(fc_b_ref[...], dec_wih,
                                 preferred_element_type=f32),
        (B, 4 * H))

    hs = []
    for t in range(out_len):                                     # fully unrolled
        if t == 0:
            # start token is zeros -> x0 @ W_ih == 0
            gates = jnp.dot(h, dec_whh, preferred_element_type=f32) + b0
        else:
            gates = jnp.dot(h, w_comb, preferred_element_type=f32) + b_comb
        h, c = lstm_cell(gates, c)
        hs.append(h)

    # ---- FC head hoisted off the serial path -------------------------------
    # One batched (T*B, H) @ (H, out_dim) matmul and a single store at exit.
    h_all = jnp.concatenate(hs, axis=0)                          # (T*B, H)
    out_ref[...] = (jnp.dot(h_all, fc_w, preferred_element_type=f32)
                    + fc_b_ref[...])


def _reorder_gates_ifgo_to_ifog(w, hidden_dim):
    """Reorder last-dim gate blocks from PyTorch i,f,g,o to kernel i,f,o,g."""
    H = hidden_dim
    return jnp.concatenate(
        [w[..., :2 * H], w[..., 3 * H:4 * H], w[..., 2 * H:3 * H]], axis=-1)


@functools.partial(jax.jit, static_argnames=("output_length",))
def seq2seq_forward(src, params, output_length):
    B, S, D_in = src.shape
    H = params["enc_w_hh"].shape[0]
    out_dim = params["fc_w"].shape[1]

    # Pad batch to the 8-row sublane tile so per-step slices are tile-aligned.
    B_pad = max(8, ((B + 7) // 8) * 8)
    src_p = jnp.pad(src, ((0, B_pad - B), (0, 0), (0, 0)))
    # Time-major flatten so the batched input projection yields contiguous
    # (B_pad, 4H) row-slabs per timestep (row index t*B_pad + b).
    src_flat = jnp.transpose(src_p, (1, 0, 2)).reshape(S * B_pad, D_in)

    # One-time gate-column reorder (i,f,g,o -> i,f,o,g) for both LSTMs.
    enc_wih = _reorder_gates_ifgo_to_ifog(params["enc_w_ih"], H)
    enc_whh = _reorder_gates_ifgo_to_ifog(params["enc_w_hh"], H)
    enc_b = _reorder_gates_ifgo_to_ifog(params["enc_b"], H)
    dec_wih = _reorder_gates_ifgo_to_ifog(params["dec_w_ih"], H)
    dec_whh = _reorder_gates_ifgo_to_ifog(params["dec_w_hh"], H)
    dec_b = _reorder_gates_ifgo_to_ifog(params["dec_b"], H)

    vmem = pl.BlockSpec(memory_space=pltpu.MemorySpace.VMEM)
    kernel = functools.partial(seq2seq_kernel,
                               batch=B_pad, src_len=S, out_len=output_length)
    out_flat = pl.pallas_call(
        kernel,
        out_shape=jax.ShapeDtypeStruct((output_length * B_pad, out_dim),
                                       jnp.float32),
        in_specs=[vmem] * 9,
        out_specs=vmem,
    )(src_flat, enc_wih, enc_whh, enc_b, dec_wih, dec_whh, dec_b,
      params["fc_w"], params["fc_b"])

    # (T*B_pad, out_dim) time-major -> (B, T, out_dim); drop padded rows.
    out = out_flat.reshape(output_length, B_pad, out_dim).transpose(1, 0, 2)
    return out[:B]


# ----------------------------------------------------------------------------
# Pure-JAX reference (PyTorch op order / gate order) for a silent sanity check.
# ----------------------------------------------------------------------------
def _lstm_step(x, h, c, w_ih, w_hh, b):
    H = w_hh.shape[0]
    gates = x @ w_ih + h @ w_hh + b
    i = jax.nn.sigmoid(gates[:, 0 * H:1 * H])
    f = jax.nn.sigmoid(gates[:, 1 * H:2 * H])
    g = jnp.tanh(gates[:, 2 * H:3 * H])
    o = jax.nn.sigmoid(gates[:, 3 * H:4 * H])
    c_new = f * c + i * g
    h_new = o * jnp.tanh(c_new)
    return h_new, c_new


def seq2seq_reference(src, params, output_length):
    B, S, _ = src.shape
    H = params["enc_w_hh"].shape[0]
    out_dim = params["fc_w"].shape[1]
    h = jnp.zeros((B, H), jnp.float32)
    c = jnp.zeros((B, H), jnp.float32)
    for t in range(S):
        h, c = _lstm_step(src[:, t, :], h, c, params["enc_w_ih"],
                          params["enc_w_hh"], params["enc_b"])
    x = jnp.zeros((B, out_dim), jnp.float32)
    outs = []
    for _ in range(output_length):
        h, c = _lstm_step(x, h, c, params["dec_w_ih"], params["dec_w_hh"],
                          params["dec_b"])
        x = h @ params["fc_w"] + params["fc_b"]
        outs.append(x)
    return jnp.stack(outs, axis=1)


if __name__ == "__main__":
    B, src_len, input_dim = 4, 10, 8
    hidden_dim, output_dim, output_length = 32, 8, 6

    key = jax.random.PRNGKey(0)
    ks = jax.random.split(key, 9)
    scale = 0.1
    params = {
        # encoder LSTM (PyTorch gate order i,f,g,o; weights stored (in, 4H))
        "enc_w_ih": scale * jax.random.normal(ks[0], (input_dim, 4 * hidden_dim), jnp.float32),
        "enc_w_hh": scale * jax.random.normal(ks[1], (hidden_dim, 4 * hidden_dim), jnp.float32),
        "enc_b": scale * jax.random.normal(ks[2], (1, 4 * hidden_dim), jnp.float32),
        # decoder LSTM (input is previous output, size output_dim)
        "dec_w_ih": scale * jax.random.normal(ks[3], (output_dim, 4 * hidden_dim), jnp.float32),
        "dec_w_hh": scale * jax.random.normal(ks[4], (hidden_dim, 4 * hidden_dim), jnp.float32),
        "dec_b": scale * jax.random.normal(ks[5], (1, 4 * hidden_dim), jnp.float32),
        # decoder linear head hidden -> output_dim
        "fc_w": scale * jax.random.normal(ks[6], (hidden_dim, output_dim), jnp.float32),
        "fc_b": scale * jax.random.normal(ks[7], (1, output_dim), jnp.float32),
    }

    src = jax.random.normal(ks[8], (B, src_len, input_dim), jnp.float32)

    out = seq2seq_forward(src, params, output_length=output_length)
    out = jax.block_until_ready(out)

    ref = seq2seq_reference(src, params, output_length)
    assert out.shape == (B, output_length, output_dim)
    assert np.allclose(np.asarray(out), np.asarray(ref), atol=1e-5, rtol=1e-5)

    print("KERNEL_OK")
</pallas_src>

<mosaic_0001>
module attributes {stable_mosaic.version = 11 : i64} {
  func.func @seq2seq_kernel(%arg0: memref<80x8xf32, #tpu.memory_space<vmem>>, %arg1: memref<8x128xf32, #tpu.memory_space<vmem>>, %arg2: memref<32x128xf32, #tpu.memory_space<vmem>>, %arg3: memref<1x128xf32, #tpu.memory_space<vmem>>, %arg4: memref<8x128xf32, #tpu.memory_space<vmem>>, %arg5: memref<32x128xf32, #tpu.memory_space<vmem>>, %arg6: memref<1x128xf32, #tpu.memory_space<vmem>>, %arg7: memref<32x8xf32, #tpu.memory_space<vmem>>, %arg8: memref<1x8xf32, #tpu.memory_space<vmem>>, %arg9: memref<48x8xf32, #tpu.memory_space<vmem>>) attributes {dimension_semantics = [], scalar_prefetch = 0 : i64, scratch_operands = 0 : i64, tpu.core_type = #tpu.core_type<tc>} {
    %c0 = arith.constant 0 : index
    %c0_0 = arith.constant 0 : index
    %0 = vector.load %arg0[%c0, %c0_0] : memref<80x8xf32, #tpu.memory_space<vmem>>, vector<80x8xf32>
    %c0_1 = arith.constant 0 : index
    %c0_2 = arith.constant 0 : index
    %1 = vector.load %arg1[%c0_1, %c0_2] : memref<8x128xf32, #tpu.memory_space<vmem>>, vector<8x128xf32>
    %cst = arith.constant dense<0.000000e+00> : vector<80x128xf32>
    %2 = tpu.matmul %0, %1, %cst {dimension_numbers = #tpu.dot_dimension_numbers<[1], [0], [0], [1], [0, 0, 1, 1], [], []>} : vector<80x8xf32>, vector<8x128xf32>, vector<80x128xf32> -> vector<80x128xf32>
    %c0_3 = arith.constant 0 : index
    %c0_4 = arith.constant 0 : index
    %3 = vector.load %arg3[%c0_3, %c0_4] : memref<1x128xf32, #tpu.memory_space<vmem>>, vector<1x128xf32>
    %4 = vector.broadcast %3 : vector<1x128xf32> to vector<80x128xf32>
    %5 = arith.addf %2, %4 : vector<80x128xf32>
    %c0_5 = arith.constant 0 : index
    %c0_6 = arith.constant 0 : index
    %6 = vector.load %arg2[%c0_5, %c0_6] : memref<32x128xf32, #tpu.memory_space<vmem>>, vector<32x128xf32>
    %cst_7 = arith.constant 0.000000e+00 : f32
    %7 = vector.broadcast %cst_7 : f32 to vector<8x32xf32>
    %cst_8 = arith.constant 0.000000e+00 : f32
    %8 = vector.broadcast %cst_8 : f32 to vector<8x32xf32>
    %9 = vector.extract_strided_slice %5 {offsets = [0, 0], sizes = [8, 128], strides = [1, 1]} : vector<80x128xf32> to vector<8x128xf32>
    %cst_9 = arith.constant dense<0.000000e+00> : vector<8x128xf32>
    %10 = tpu.matmul %7, %6, %cst_9 {dimension_numbers = #tpu.dot_dimension_numbers<[1], [0], [0], [1], [0, 0, 1, 1], [], []>} : vector<8x32xf32>, vector<32x128xf32>, vector<8x128xf32> -> vector<8x128xf32>
    %11 = arith.addf %9, %10 : vector<8x128xf32>
    %12 = vector.extract_strided_slice %11 {offsets = [0, 0], sizes = [8, 96], strides = [1, 1]} : vector<8x128xf32> to vector<8x96xf32>
    %13 = arith.negf %12 : vector<8x96xf32>
    %14 = math.exp %13 : vector<8x96xf32>
    %cst_10 = arith.constant 1.000000e+00 : f32
    %15 = vector.broadcast %cst_10 : f32 to vector<8x96xf32>
    %16 = arith.addf %15, %14 : vector<8x96xf32>
    %17 = arith.divf %15, %16 : vector<8x96xf32>
    %18 = vector.extract_strided_slice %17 {offsets = [0, 0], sizes = [8, 32], strides = [1, 1]} : vector<8x96xf32> to vector<8x32xf32>
    %19 = vector.extract_strided_slice %17 {offsets = [0, 32], sizes = [8, 32], strides = [1, 1]} : vector<8x96xf32> to vector<8x32xf32>
    %20 = vector.extract_strided_slice %17 {offsets = [0, 64], sizes = [8, 32], strides = [1, 1]} : vector<8x96xf32> to vector<8x32xf32>
    %21 = vector.extract_strided_slice %11 {offsets = [0, 96], sizes = [8, 32], strides = [1, 1]} : vector<8x128xf32> to vector<8x32xf32>
    %22 = math.tanh %21 : vector<8x32xf32>
    %23 = arith.mulf %19, %8 : vector<8x32xf32>
    %24 = arith.mulf %18, %22 : vector<8x32xf32>
    %25 = arith.addf %23, %24 : vector<8x32xf32>
    %26 = math.tanh %25 : vector<8x32xf32>
    %27 = arith.mulf %20, %26 : vector<8x32xf32>
    %28 = vector.extract_strided_slice %5 {offsets = [8, 0], sizes = [8, 128], strides = [1, 1]} : vector<80x128xf32> to vector<8x128xf32>
    %cst_11 = arith.constant dense<0.000000e+00> : vector<8x128xf32>
    %29 = tpu.matmul %27, %6, %cst_11 {dimension_numbers = #tpu.dot_dimension_numbers<[1], [0], [0], [1], [0, 0, 1, 1], [], []>} : vector<8x32xf32>, vector<32x128xf32>, vector<8x128xf32> -> vector<8x128xf32>
    %30 = arith.addf %28, %29 : vector<8x128xf32>
    %31 = vector.extract_strided_slice %30 {offsets = [0, 0], sizes = [8, 96], strides = [1, 1]} : vector<8x128xf32> to vector<8x96xf32>
    %32 = arith.negf %31 : vector<8x96xf32>
    %33 = math.exp %32 : vector<8x96xf32>
    %cst_12 = arith.constant 1.000000e+00 : f32
    %34 = vector.broadcast %cst_12 : f32 to vector<8x96xf32>
    %35 = arith.addf %34, %33 : vector<8x96xf32>
    %36 = arith.divf %34, %35 : vector<8x96xf32>
    %37 = vector.extract_strided_slice %36 {offsets = [0, 0], sizes = [8, 32], strides = [1, 1]} : vector<8x96xf32> to vector<8x32xf32>
    %38 = vector.extract_strided_slice %36 {offsets = [0, 32], sizes = [8, 32], strides = [1, 1]} : vector<8x96xf32> to vector<8x32xf32>
    %39 = vector.extract_strided_slice %36 {offsets = [0, 64], sizes = [8, 32], strides = [1, 1]} : vector<8x96xf32> to vector<8x32xf32>
    %40 = vector.extract_strided_slice %30 {offsets = [0, 96], sizes = [8, 32], strides = [1, 1]} : vector<8x128xf32> to vector<8x32xf32>
    %41 = math.tanh %40 : vector<8x32xf32>
    %42 = arith.mulf %38, %25 : vector<8x32xf32>
    %43 = arith.mulf %37, %41 : vector<8x32xf32>
    %44 = arith.addf %42, %43 : vector<8x32xf32>
    %45 = math.tanh %44 : vector<8x32xf32>
    %46 = arith.mulf %39, %45 : vector<8x32xf32>
    %47 = vector.extract_strided_slice %5 {offsets = [16, 0], sizes = [8, 128], strides = [1, 1]} : vector<80x128xf32> to vector<8x128xf32>
    %cst_13 = arith.constant dense<0.000000e+00> : vector<8x128xf32>
    %48 = tpu.matmul %46, %6, %cst_13 {dimension_numbers = #tpu.dot_dimension_numbers<[1], [0], [0], [1], [0, 0, 1, 1], [], []>} : vector<8x32xf32>, vector<32x128xf32>, vector<8x128xf32> -> vector<8x128xf32>
    %49 = arith.addf %47, %48 : vector<8x128xf32>
    %50 = vector.extract_strided_slice %49 {offsets = [0, 0], sizes = [8, 96], strides = [1, 1]} : vector<8x128xf32> to vector<8x96xf32>
    %51 = arith.negf %50 : vector<8x96xf32>
    %52 = math.exp %51 : vector<8x96xf32>
    %cst_14 = arith.constant 1.000000e+00 : f32
    %53 = vector.broadcast %cst_14 : f32 to vector<8x96xf32>
    %54 = arith.addf %53, %52 : vector<8x96xf32>
    %55 = arith.divf %53, %54 : vector<8x96xf32>
    %56 = vector.extract_strided_slice %55 {offsets = [0, 0], sizes = [8, 32], strides = [1, 1]} : vector<8x96xf32> to vector<8x32xf32>
    %57 = vector.extract_strided_slice %55 {offsets = [0, 32], sizes = [8, 32], strides = [1, 1]} : vector<8x96xf32> to vector<8x32xf32>
    %58 = vector.extract_strided_slice %55 {offsets = [0, 64], sizes = [8, 32], strides = [1, 1]} : vector<8x96xf32> to vector<8x32xf32>
    %59 = vector.extract_strided_slice %49 {offsets = [0, 96], sizes = [8, 32], strides = [1, 1]} : vector<8x128xf32> to vector<8x32xf32>
    %60 = math.tanh %59 : vector<8x32xf32>
    %61 = arith.mulf %57, %44 : vector<8x32xf32>
    %62 = arith.mulf %56, %60 : vector<8x32xf32>
    %63 = arith.addf %61, %62 : vector<8x32xf32>
    %64 = math.tanh %63 : vector<8x32xf32>
    %65 = arith.mulf %58, %64 : vector<8x32xf32>
    %66 = vector.extract_strided_slice %5 {offsets = [24, 0], sizes = [8, 128], strides = [1, 1]} : vector<80x128xf32> to vector<8x128xf32>
    %cst_15 = arith.constant dense<0.000000e+00> : vector<8x128xf32>
    %67 = tpu.matmul %65, %6, %cst_15 {dimension_numbers = #tpu.dot_dimension_numbers<[1], [0], [0], [1], [0, 0, 1, 1], [], []>} : vector<8x32xf32>, vector<32x128xf32>, vector<8x128xf32> -> vector<8x128xf32>
    %68 = arith.addf %66, %67 : vector<8x128xf32>
    %69 = vector.extract_strided_slice %68 {offsets = [0, 0], sizes = [8, 96], strides = [1, 1]} : vector<8x128xf32> to vector<8x96xf32>
    %70 = arith.negf %69 : vector<8x96xf32>
    %71 = math.exp %70 : vector<8x96xf32>
    %cst_16 = arith.constant 1.000000e+00 : f32
    %72 = vector.broadcast %cst_16 : f32 to vector<8x96xf32>
    %73 = arith.addf %72, %71 : vector<8x96xf32>
    %74 = arith.divf %72, %73 : vector<8x96xf32>
    %75 = vector.extract_strided_slice %74 {offsets = [0, 0], sizes = [8, 32], strides = [1, 1]} : vector<8x96xf32> to vector<8x32xf32>
    %76 = vector.extract_strided_slice %74 {offsets = [0, 32], sizes = [8, 32], strides = [1, 1]} : vector<8x96xf32> to vector<8x32xf32>
    %77 = vector.extract_strided_slice %74 {offsets = [0, 64], sizes = [8, 32], strides = [1, 1]} : vector<8x96xf32> to vector<8x32xf32>
    %78 = vector.extract_strided_slice %68 {offsets = [0, 96], sizes = [8, 32], strides = [1, 1]} : vector<8x128xf32> to vector<8x32xf32>
    %79 = math.tanh %78 : vector<8x32xf32>
    %80 = arith.mulf %76, %63 : vector<8x32xf32>
    %81 = arith.mulf %75, %79 : vector<8x32xf32>
    %82 = arith.addf %80, %81 : vector<8x32xf32>
    %83 = math.tanh %82 : vector<8x32xf32>
    %84 = arith.mulf %77, %83 : vector<8x32xf32>
    %85 = vector.extract_strided_slice %5 {offsets = [32, 0], sizes = [8, 128], strides = [1, 1]} : vector<80x128xf32> to vector<8x128xf32>
    %cst_17 = arith.constant dense<0.000000e+00> : vector<8x128xf32>
    %86 = tpu.matmul %84, %6, %cst_17 {dimension_numbers = #tpu.dot_dimension_numbers<[1], [0], [0], [1], [0, 0, 1, 1], [], []>} : vector<8x32xf32>, vector<32x128xf32>, vector<8x128xf32> -> vector<8x128xf32>
    %87 = arith.addf %85, %86 : vector<8x128xf32>
    %88 = vector.extract_strided_slice %87 {offsets = [0, 0], sizes = [8, 96], strides = [1, 1]} : vector<8x128xf32> to vector<8x96xf32>
    %89 = arith.negf %88 : vector<8x96xf32>
    %90 = math.exp %89 : vector<8x96xf32>
    %cst_18 = arith.constant 1.000000e+00 : f32
    %91 = vector.broadcast %cst_18 : f32 to vector<8x96xf32>
    %92 = arith.addf %91, %90 : vector<8x96xf32>
    %93 = arith.divf %91, %92 : vector<8x96xf32>
    %94 = vector.extract_strided_slice %93 {offsets = [0, 0], sizes = [8, 32], strides = [1, 1]} : vector<8x96xf32> to vector<8x32xf32>
    %95 = vector.extract_strided_slice %93 {offsets = [0, 32], sizes = [8, 32], strides = [1, 1]} : vector<8x96xf32> to vector<8x32xf32>
    %96 = vector.extract_strided_slice %93 {offsets = [0, 64], sizes = [8, 32], strides = [1, 1]} : vector<8x96xf32> to vector<8x32xf32>
    %97 = vector.extract_strided_slice %87 {offsets = [0, 96], sizes = [8, 32], strides = [1, 1]} : vector<8x128xf32> to vector<8x32xf32>
    %98 = math.tanh %97 : vector<8x32xf32>
    %99 = arith.mulf %95, %82 : vector<8x32xf32>
    %100 = arith.mulf %94, %98 : vector<8x32xf32>
    %101 = arith.addf %99, %100 : vector<8x32xf32>
    %102 = math.tanh %101 : vector<8x32xf32>
    %103 = arith.mulf %96, %102 : vector<8x32xf32>
    %104 = vector.extract_strided_slice %5 {offsets = [40, 0], sizes = [8, 128], strides = [1, 1]} : vector<80x128xf32> to vector<8x128xf32>
    %cst_19 = arith.constant dense<0.000000e+00> : vector<8x128xf32>
    %105 = tpu.matmul %103, %6, %cst_19 {dimension_numbers = #tpu.dot_dimension_numbers<[1], [0], [0], [1], [0, 0, 1, 1], [], []>} : vector<8x32xf32>, vector<32x128xf32>, vector<8x128xf32> -> vector<8x128xf32>
    %106 = arith.addf %104, %105 : vector<8x128xf32>
    %107 = vector.extract_strided_slice %106 {offsets = [0, 0], sizes = [8, 96], strides = [1, 1]} : vector<8x128xf32> to vector<8x96xf32>
    %108 = arith.negf %107 : vector<8x96xf32>
    %109 = math.exp %108 : vector<8x96xf32>
    %cst_20 = arith.constant 1.000000e+00 : f32
    %110 = vector.broadcast %cst_20 : f32 to vector<8x96xf32>
    %111 = arith.addf %110, %109 : vector<8x96xf32>
    %112 = arith.divf %110, %111 : vector<8x96xf32>
    %113 = vector.extract_strided_slice %112 {offsets = [0, 0], sizes = [8, 32], strides = [1, 1]} : vector<8x96xf32> to vector<8x32xf32>
    %114 = vector.extract_strided_slice %112 {offsets = [0, 32], sizes = [8, 32], strides = [1, 1]} : vector<8x96xf32> to vector<8x32xf32>
    %115 = vector.extract_strided_slice %112 {offsets = [0, 64], sizes = [8, 32], strides = [1, 1]} : vector<8x96xf32> to vector<8x32xf32>
    %116 = vector.extract_strided_slice %106 {offsets = [0, 96], sizes = [8, 32], strides = [1, 1]} : vector<8x128xf32> to vector<8x32xf32>
    %117 = math.tanh %116 : vector<8x32xf32>
    %118 = arith.mulf %114, %101 : vector<8x32xf32>
    %119 = arith.mulf %113, %117 : vector<8x32xf32>
    %120 = arith.addf %118, %119 : vector<8x32xf32>
    %121 = math.tanh %120 : vector<8x32xf32>
    %122 = arith.mulf %115, %121 : vector<8x32xf32>
    %123 = vector.extract_strided_slice %5 {offsets = [48, 0], sizes = [8, 128], strides = [1, 1]} : vector<80x128xf32> to vector<8x128xf32>
    %cst_21 = arith.constant dense<0.000000e+00> : vector<8x128xf32>
    %124 = tpu.matmul %122, %6, %cst_21 {dimension_numbers = #tpu.dot_dimension_numbers<[1], [0], [0], [1], [0, 0, 1, 1], [], []>} : vector<8x32xf32>, vector<32x128xf32>, vector<8x128xf32> -> vector<8x128xf32>
    %125 = arith.addf %123, %124 : vector<8x128xf32>
    %126 = vector.extract_strided_slice %125 {offsets = [0, 0], sizes = [8, 96], strides = [1, 1]} : vector<8x128xf32> to vector<8x96xf32>
    %127 = arith.negf %126 : vector<8x96xf32>
    %128 = math.exp %127 : vector<8x96xf32>
    %cst_22 = arith.constant 1.000000e+00 : f32
    %129 = vector.broadcast %cst_22 : f32 to vector<8x96xf32>
    %130 = arith.addf %129, %128 : vector<8x96xf32>
    %131 = arith.divf %129, %130 : vector<8x96xf32>
    %132 = vector.extract_strided_slice %131 {offsets = [0, 0], sizes = [8, 32], strides = [1, 1]} : vector<8x96xf32> to vector<8x32xf32>
    %133 = vector.extract_strided_slice %131 {offsets = [0, 32], sizes = [8, 32], strides = [1, 1]} : vector<8x96xf32> to vector<8x32xf32>
    %134 = vector.extract_strided_slice %131 {offsets = [0, 64], sizes = [8, 32], strides = [1, 1]} : vector<8x96xf32> to vector<8x32xf32>
    %135 = vector.extract_strided_slice %125 {offsets = [0, 96], sizes = [8, 32], strides = [1, 1]} : vector<8x128xf32> to vector<8x32xf32>
    %136 = math.tanh %135 : vector<8x32xf32>
    %137 = arith.mulf %133, %120 : vector<8x32xf32>
    %138 = arith.mulf %132, %136 : vector<8x32xf32>
    %139 = arith.addf %137, %138 : vector<8x32xf32>
    %140 = math.tanh %139 : vector<8x32xf32>
    %141 = arith.mulf %134, %140 : vector<8x32xf32>
    %142 = vector.extract_strided_slice %5 {offsets = [56, 0], sizes = [8, 128], strides = [1, 1]} : vector<80x128xf32> to vector<8x128xf32>
    %cst_23 = arith.constant dense<0.000000e+00> : vector<8x128xf32>
    %143 = tpu.matmul %141, %6, %cst_23 {dimension_numbers = #tpu.dot_dimension_numbers<[1], [0], [0], [1], [0, 0, 1, 1], [], []>} : vector<8x32xf32>, vector<32x128xf32>, vector<8x128xf32> -> vector<8x128xf32>
    %144 = arith.addf %142, %143 : vector<8x128xf32>
    %145 = vector.extract_strided_slice %144 {offsets = [0, 0], sizes = [8, 96], strides = [1, 1]} : vector<8x128xf32> to vector<8x96xf32>
    %146 = arith.negf %145 : vector<8x96xf32>
    %147 = math.exp %146 : vector<8x96xf32>
    %cst_24 = arith.constant 1.000000e+00 : f32
    %148 = vector.broadcast %cst_24 : f32 to vector<8x96xf32>
    %149 = arith.addf %148, %147 : vector<8x96xf32>
    %150 = arith.divf %148, %149 : vector<8x96xf32>
    %151 = vector.extract_strided_slice %150 {offsets = [0, 0], sizes = [8, 32], strides = [1, 1]} : vector<8x96xf32> to vector<8x32xf32>
    %152 = vector.extract_strided_slice %150 {offsets = [0, 32], sizes = [8, 32], strides = [1, 1]} : vector<8x96xf32> to vector<8x32xf32>
    %153 = vector.extract_strided_slice %150 {offsets = [0, 64], sizes = [8, 32], strides = [1, 1]} : vector<8x96xf32> to vector<8x32xf32>
    %154 = vector.extract_strided_slice %144 {offsets = [0, 96], sizes = [8, 32], strides = [1, 1]} : vector<8x128xf32> to vector<8x32xf32>
    %155 = math.tanh %154 : vector<8x32xf32>
    %156 = arith.mulf %152, %139 : vector<8x32xf32>
    %157 = arith.mulf %151, %155 : vector<8x32xf32>
    %158 = arith.addf %156, %157 : vector<8x32xf32>
    %159 = math.tanh %158 : vector<8x32xf32>
    %160 = arith.mulf %153, %159 : vector<8x32xf32>
    %161 = vector.extract_strided_slice %5 {offsets = [64, 0], sizes = [8, 128], strides = [1, 1]} : vector<80x128xf32> to vector<8x128xf32>
    %cst_25 = arith.constant dense<0.000000e+00> : vector<8x128xf32>
    %162 = tpu.matmul %160, %6, %cst_25 {dimension_numbers = #tpu.dot_dimension_numbers<[1], [0], [0], [1], [0, 0, 1, 1], [], []>} : vector<8x32xf32>, vector<32x128xf32>, vector<8x128xf32> -> vector<8x128xf32>
    %163 = arith.addf %161, %162 : vector<8x128xf32>
    %164 = vector.extract_strided_slice %163 {offsets = [0, 0], sizes = [8, 96], strides = [1, 1]} : vector<8x128xf32> to vector<8x96xf32>
    %165 = arith.negf %164 : vector<8x96xf32>
    %166 = math.exp %165 : vector<8x96xf32>
    %cst_26 = arith.constant 1.000000e+00 : f32
    %167 = vector.broadcast %cst_26 : f32 to vector<8x96xf32>
    %168 = arith.addf %167, %166 : vector<8x96xf32>
    %169 = arith.divf %167, %168 : vector<8x96xf32>
    %170 = vector.extract_strided_slice %169 {offsets = [0, 0], sizes = [8, 32], strides = [1, 1]} : vector<8x96xf32> to vector<8x32xf32>
    %171 = vector.extract_strided_slice %169 {offsets = [0, 32], sizes = [8, 32], strides = [1, 1]} : vector<8x96xf32> to vector<8x32xf32>
    %172 = vector.extract_strided_slice %169 {offsets = [0, 64], sizes = [8, 32], strides = [1, 1]} : vector<8x96xf32> to vector<8x32xf32>
    %173 = vector.extract_strided_slice %163 {offsets = [0, 96], sizes = [8, 32], strides = [1, 1]} : vector<8x128xf32> to vector<8x32xf32>
    %174 = math.tanh %173 : vector<8x32xf32>
    %175 = arith.mulf %171, %158 : vector<8x32xf32>
    %176 = arith.mulf %170, %174 : vector<8x32xf32>
    %177 = arith.addf %175, %176 : vector<8x32xf32>
    %178 = math.tanh %177 : vector<8x32xf32>
    %179 = arith.mulf %172, %178 : vector<8x32xf32>
    %180 = vector.extract_strided_slice %5 {offsets = [72, 0], sizes = [8, 128], strides = [1, 1]} : vector<80x128xf32> to vector<8x128xf32>
    %cst_27 = arith.constant dense<0.000000e+00> : vector<8x128xf32>
    %181 = tpu.matmul %179, %6, %cst_27 {dimension_numbers = #tpu.dot_dimension_numbers<[1], [0], [0], [1], [0, 0, 1, 1], [], []>} : vector<8x32xf32>, vector<32x128xf32>, vector<8x128xf32> -> vector<8x128xf32>
    %182 = arith.addf %180, %181 : vector<8x128xf32>
    %183 = vector.extract_strided_slice %182 {offsets = [0, 0], sizes = [8, 96], strides = [1, 1]} : vector<8x128xf32> to vector<8x96xf32>
    %184 = arith.negf %183 : vector<8x96xf32>
    %185 = math.exp %184 : vector<8x96xf32>
    %cst_28 = arith.constant 1.000000e+00 : f32
    %186 = vector.broadcast %cst_28 : f32 to vector<8x96xf32>
    %187 = arith.addf %186, %185 : vector<8x96xf32>
    %188 = arith.divf %186, %187 : vector<8x96xf32>
    %189 = vector.extract_strided_slice %188 {offsets = [0, 0], sizes = [8, 32], strides = [1, 1]} : vector<8x96xf32> to vector<8x32xf32>
    %190 = vector.extract_strided_slice %188 {offsets = [0, 32], sizes = [8, 32], strides = [1, 1]} : vector<8x96xf32> to vector<8x32xf32>
    %191 = vector.extract_strided_slice %188 {offsets = [0, 64], sizes = [8, 32], strides = [1, 1]} : vector<8x96xf32> to vector<8x32xf32>
    %192 = vector.extract_strided_slice %182 {offsets = [0, 96], sizes = [8, 32], strides = [1, 1]} : vector<8x128xf32> to vector<8x32xf32>
    %193 = math.tanh %192 : vector<8x32xf32>
    %194 = arith.mulf %190, %177 : vector<8x32xf32>
    %195 = arith.mulf %189, %193 : vector<8x32xf32>
    %196 = arith.addf %194, %195 : vector<8x32xf32>
    %197 = math.tanh %196 : vector<8x32xf32>
    %198 = arith.mulf %191, %197 : vector<8x32xf32>
    %c0_29 = arith.constant 0 : index
    %c0_30 = arith.constant 0 : index
    %199 = vector.load %arg4[%c0_29, %c0_30] : memref<8x128xf32, #tpu.memory_space<vmem>>, vector<8x128xf32>
    %c0_31 = arith.constant 0 : index
    %c0_32 = arith.constant 0 : index
    %200 = vector.load %arg5[%c0_31, %c0_32] : memref<32x128xf32, #tpu.memory_space<vmem>>, vector<32x128xf32>
    %c0_33 = arith.constant 0 : index
    %c0_34 = arith.constant 0 : index
    %201 = vector.load %arg7[%c0_33, %c0_34] : memref<32x8xf32, #tpu.memory_space<vmem>>, vector<32x8xf32>
    %cst_35 = arith.constant dense<0.000000e+00> : vector<32x128xf32>
    %202 = tpu.matmul %201, %199, %cst_35 {dimension_numbers = #tpu.dot_dimension_numbers<[1], [0], [0], [1], [0, 0, 1, 1], [], []>} : vector<32x8xf32>, vector<8x128xf32>, vector<32x128xf32> -> vector<32x128xf32>
    %203 = arith.addf %200, %202 : vector<32x128xf32>
    %c0_36 = arith.constant 0 : index
    %c0_37 = arith.constant 0 : index
    %204 = vector.load %arg6[%c0_36, %c0_37] : memref<1x128xf32, #tpu.memory_space<vmem>>, vector<1x128xf32>
    %205 = vector.shape_cast %204 : vector<1x128xf32> to vector<1x128xf32>
    %206 = vector.broadcast %205 : vector<1x128xf32> to vector<8x128xf32>
    %c0_38 = arith.constant 0 : index
    %c0_39 = arith.constant 0 : index
    %207 = vector.load %arg6[%c0_38, %c0_39] : memref<1x128xf32, #tpu.memory_space<vmem>>, vector<1x128xf32>
    %c0_40 = arith.constant 0 : index
    %c0_41 = arith.constant 0 : index
    %208 = vector.load %arg8[%c0_40, %c0_41] : memref<1x8xf32, #tpu.memory_space<vmem>>, vector<1x8xf32>
    %cst_42 = arith.constant dense<0.000000e+00> : vector<1x128xf32>
    %209 = tpu.matmul %208, %199, %cst_42 {dimension_numbers = #tpu.dot_dimension_numbers<[1], [0], [0], [1], [0, 0, 1, 1], [], []>} : vector<1x8xf32>, vector<8x128xf32>, vector<1x128xf32> -> vector<1x128xf32>
    %210 = arith.addf %207, %209 : vector<1x128xf32>
    %211 = vector.shape_cast %210 : vector<1x128xf32> to vector<1x128xf32>
    %212 = vector.broadcast %211 : vector<1x128xf32> to vector<8x128xf32>
    %cst_43 = arith.constant dense<0.000000e+00> : vector<8x128xf32>
    %213 = tpu.matmul %198, %200, %cst_43 {dimension_numbers = #tpu.dot_dimension_numbers<[1], [0], [0], [1], [0, 0, 1, 1], [], []>} : vector<8x32xf32>, vector<32x128xf32>, vector<8x128xf32> -> vector<8x128xf32>
    %214 = arith.addf %213, %206 : vector<8x128xf32>
    %215 = vector.extract_strided_slice %214 {offsets = [0, 0], sizes = [8, 96], strides = [1, 1]} : vector<8x128xf32> to vector<8x96xf32>
    %216 = arith.negf %215 : vector<8x96xf32>
    %217 = math.exp %216 : vector<8x96xf32>
    %cst_44 = arith.constant 1.000000e+00 : f32
    %218 = vector.broadcast %cst_44 : f32 to vector<8x96xf32>
    %219 = arith.addf %218, %217 : vector<8x96xf32>
    %220 = arith.divf %218, %219 : vector<8x96xf32>
    %221 = vector.extract_strided_slice %220 {offsets = [0, 0], sizes = [8, 32], strides = [1, 1]} : vector<8x96xf32> to vector<8x32xf32>
    %222 = vector.extract_strided_slice %220 {offsets = [0, 32], sizes = [8, 32], strides = [1, 1]} : vector<8x96xf32> to vector<8x32xf32>
    %223 = vector.extract_strided_slice %220 {offsets = [0, 64], sizes = [8, 32], strides = [1, 1]} : vector<8x96xf32> to vector<8x32xf32>
    %224 = vector.extract_strided_slice %214 {offsets = [0, 96], sizes = [8, 32], strides = [1, 1]} : vector<8x128xf32> to vector<8x32xf32>
    %225 = math.tanh %224 : vector<8x32xf32>
    %226 = arith.mulf %222, %196 : vector<8x32xf32>
    %227 = arith.mulf %221, %225 : vector<8x32xf32>
    %228 = arith.addf %226, %227 : vector<8x32xf32>
    %229 = math.tanh %228 : vector<8x32xf32>
    %230 = arith.mulf %223, %229 : vector<8x32xf32>
    %cst_45 = arith.constant dense<0.000000e+00> : vector<8x128xf32>
    %231 = tpu.matmul %230, %203, %cst_45 {dimension_numbers = #tpu.dot_dimension_numbers<[1], [0], [0], [1], [0, 0, 1, 1], [], []>} : vector<8x32xf32>, vector<32x128xf32>, vector<8x128xf32> -> vector<8x128xf32>
    %232 = arith.addf %231, %212 : vector<8x128xf32>
    %233 = vector.extract_strided_slice %232 {offsets = [0, 0], sizes = [8, 96], strides = [1, 1]} : vector<8x128xf32> to vector<8x96xf32>
    %234 = arith.negf %233 : vector<8x96xf32>
    %235 = math.exp %234 : vector<8x96xf32>
    %cst_46 = arith.constant 1.000000e+00 : f32
    %236 = vector.broadcast %cst_46 : f32 to vector<8x96xf32>
    %237 = arith.addf %236, %235 : vector<8x96xf32>
    %238 = arith.divf %236, %237 : vector<8x96xf32>
    %239 = vector.extract_strided_slice %238 {offsets = [0, 0], sizes = [8, 32], strides = [1, 1]} : vector<8x96xf32> to vector<8x32xf32>
    %240 = vector.extract_strided_slice %238 {offsets = [0, 32], sizes = [8, 32], strides = [1, 1]} : vector<8x96xf32> to vector<8x32xf32>
    %241 = vector.extract_strided_slice %238 {offsets = [0, 64], sizes = [8, 32], strides = [1, 1]} : vector<8x96xf32> to vector<8x32xf32>
    %242 = vector.extract_strided_slice %232 {offsets = [0, 96], sizes = [8, 32], strides = [1, 1]} : vector<8x128xf32> to vector<8x32xf32>
    %243 = math.tanh %242 : vector<8x32xf32>
    %244 = arith.mulf %240, %228 : vector<8x32xf32>
    %245 = arith.mulf %239, %243 : vector<8x32xf32>
    %246 = arith.addf %244, %245 : vector<8x32xf32>
    %247 = math.tanh %246 : vector<8x32xf32>
    %248 = arith.mulf %241, %247 : vector<8x32xf32>
    %cst_47 = arith.constant dense<0.000000e+00> : vector<8x128xf32>
    %249 = tpu.matmul %248, %203, %cst_47 {dimension_numbers = #tpu.dot_dimension_numbers<[1], [0], [0], [1], [0, 0, 1, 1], [], []>} : vector<8x32xf32>, vector<32x128xf32>, vector<8x128xf32> -> vector<8x128xf32>
    %250 = arith.addf %249, %212 : vector<8x128xf32>
    %251 = vector.extract_strided_slice %250 {offsets = [0, 0], sizes = [8, 96], strides = [1, 1]} : vector<8x128xf32> to vector<8x96xf32>
    %252 = arith.negf %251 : vector<8x96xf32>
    %253 = math.exp %252 : vector<8x96xf32>
    %cst_48 = arith.constant 1.000000e+00 : f32
    %254 = vector.broadcast %cst_48 : f32 to vector<8x96xf32>
    %255 = arith.addf %254, %253 : vector<8x96xf32>
    %256 = arith.divf %254, %255 : vector<8x96xf32>
    %257 = vector.extract_strided_slice %256 {offsets = [0, 0], sizes = [8, 32], strides = [1, 1]} : vector<8x96xf32> to vector<8x32xf32>
    %258 = vector.extract_strided_slice %256 {offsets = [0, 32], sizes = [8, 32], strides = [1, 1]} : vector<8x96xf32> to vector<8x32xf32>
    %259 = vector.extract_strided_slice %256 {offsets = [0, 64], sizes = [8, 32], strides = [1, 1]} : vector<8x96xf32> to vector<8x32xf32>
    %260 = vector.extract_strided_slice %250 {offsets = [0, 96], sizes = [8, 32], strides = [1, 1]} : vector<8x128xf32> to vector<8x32xf32>
    %261 = math.tanh %260 : vector<8x32xf32>
    %262 = arith.mulf %258, %246 : vector<8x32xf32>
    %263 = arith.mulf %257, %261 : vector<8x32xf32>
    %264 = arith.addf %262, %263 : vector<8x32xf32>
    %265 = math.tanh %264 : vector<8x32xf32>
    %266 = arith.mulf %259, %265 : vector<8x32xf32>
    %cst_49 = arith.constant dense<0.000000e+00> : vector<8x128xf32>
    %267 = tpu.matmul %266, %203, %cst_49 {dimension_numbers = #tpu.dot_dimension_numbers<[1], [0], [0], [1], [0, 0, 1, 1], [], []>} : vector<8x32xf32>, vector<32x128xf32>, vector<8x128xf32> -> vector<8x128xf32>
    %268 = arith.addf %267, %212 : vector<8x128xf32>
    %269 = vector.extract_strided_slice %268 {offsets = [0, 0], sizes = [8, 96], strides = [1, 1]} : vector<8x128xf32> to vector<8x96xf32>
    %270 = arith.negf %269 : vector<8x96xf32>
    %271 = math.exp %270 : vector<8x96xf32>
    %cst_50 = arith.constant 1.000000e+00 : f32
    %272 = vector.broadcast %cst_50 : f32 to vector<8x96xf32>
    %273 = arith.addf %272, %271 : vector<8x96xf32>
    %274 = arith.divf %272, %273 : vector<8x96xf32>
    %275 = vector.extract_strided_slice %274 {offsets = [0, 0], sizes = [8, 32], strides = [1, 1]} : vector<8x96xf32> to vector<8x32xf32>
    %276 = vector.extract_strided_slice %274 {offsets = [0, 32], sizes = [8, 32], strides = [1, 1]} : vector<8x96xf32> to vector<8x32xf32>
    %277 = vector.extract_strided_slice %274 {offsets = [0, 64], sizes = [8, 32], strides = [1, 1]} : vector<8x96xf32> to vector<8x32xf32>
    %278 = vector.extract_strided_slice %268 {offsets = [0, 96], sizes = [8, 32], strides = [1, 1]} : vector<8x128xf32> to vector<8x32xf32>
    %279 = math.tanh %278 : vector<8x32xf32>
    %280 = arith.mulf %276, %264 : vector<8x32xf32>
    %281 = arith.mulf %275, %279 : vector<8x32xf32>
    %282 = arith.addf %280, %281 : vector<8x32xf32>
    %283 = math.tanh %282 : vector<8x32xf32>
    %284 = arith.mulf %277, %283 : vector<8x32xf32>
    %cst_51 = arith.constant dense<0.000000e+00> : vector<8x128xf32>
    %285 = tpu.matmul %284, %203, %cst_51 {dimension_numbers = #tpu.dot_dimension_numbers<[1], [0], [0], [1], [0, 0, 1, 1], [], []>} : vector<8x32xf32>, vector<32x128xf32>, vector<8x128xf32> -> vector<8x128xf32>
    %286 = arith.addf %285, %212 : vector<8x128xf32>
    %287 = vector.extract_strided_slice %286 {offsets = [0, 0], sizes = [8, 96], strides = [1, 1]} : vector<8x128xf32> to vector<8x96xf32>
    %288 = arith.negf %287 : vector<8x96xf32>
    %289 = math.exp %288 : vector<8x96xf32>
    %cst_52 = arith.constant 1.000000e+00 : f32
    %290 = vector.broadcast %cst_52 : f32 to vector<8x96xf32>
    %291 = arith.addf %290, %289 : vector<8x96xf32>
    %292 = arith.divf %290, %291 : vector<8x96xf32>
    %293 = vector.extract_strided_slice %292 {offsets = [0, 0], sizes = [8, 32], strides = [1, 1]} : vector<8x96xf32> to vector<8x32xf32>
    %294 = vector.extract_strided_slice %292 {offsets = [0, 32], sizes = [8, 32], strides = [1, 1]} : vector<8x96xf32> to vector<8x32xf32>
    %295 = vector.extract_strided_slice %292 {offsets = [0, 64], sizes = [8, 32], strides = [1, 1]} : vector<8x96xf32> to vector<8x32xf32>
    %296 = vector.extract_strided_slice %286 {offsets = [0, 96], sizes = [8, 32], strides = [1, 1]} : vector<8x128xf32> to vector<8x32xf32>
    %297 = math.tanh %296 : vector<8x32xf32>
    %298 = arith.mulf %294, %282 : vector<8x32xf32>
    %299 = arith.mulf %293, %297 : vector<8x32xf32>
    %300 = arith.addf %298, %299 : vector<8x32xf32>
    %301 = math.tanh %300 : vector<8x32xf32>
    %302 = arith.mulf %295, %301 : vector<8x32xf32>
    %cst_53 = arith.constant dense<0.000000e+00> : vector<8x128xf32>
    %303 = tpu.matmul %302, %203, %cst_53 {dimension_numbers = #tpu.dot_dimension_numbers<[1], [0], [0], [1], [0, 0, 1, 1], [], []>} : vector<8x32xf32>, vector<32x128xf32>, vector<8x128xf32> -> vector<8x128xf32>
    %304 = arith.addf %303, %212 : vector<8x128xf32>
    %305 = vector.extract_strided_slice %304 {offsets = [0, 0], sizes = [8, 96], strides = [1, 1]} : vector<8x128xf32> to vector<8x96xf32>
    %306 = arith.negf %305 : vector<8x96xf32>
    %307 = math.exp %306 : vector<8x96xf32>
    %cst_54 = arith.constant 1.000000e+00 : f32
    %308 = vector.broadcast %cst_54 : f32 to vector<8x96xf32>
    %309 = arith.addf %308, %307 : vector<8x96xf32>
    %310 = arith.divf %308, %309 : vector<8x96xf32>
    %311 = vector.extract_strided_slice %310 {offsets = [0, 0], sizes = [8, 32], strides = [1, 1]} : vector<8x96xf32> to vector<8x32xf32>
    %312 = vector.extract_strided_slice %310 {offsets = [0, 32], sizes = [8, 32], strides = [1, 1]} : vector<8x96xf32> to vector<8x32xf32>
    %313 = vector.extract_strided_slice %310 {offsets = [0, 64], sizes = [8, 32], strides = [1, 1]} : vector<8x96xf32> to vector<8x32xf32>
    %314 = vector.extract_strided_slice %304 {offsets = [0, 96], sizes = [8, 32], strides = [1, 1]} : vector<8x128xf32> to vector<8x32xf32>
    %315 = math.tanh %314 : vector<8x32xf32>
    %316 = arith.mulf %312, %300 : vector<8x32xf32>
    %317 = arith.mulf %311, %315 : vector<8x32xf32>
    %318 = arith.addf %316, %317 : vector<8x32xf32>
    %319 = math.tanh %318 : vector<8x32xf32>
    %320 = arith.mulf %313, %319 : vector<8x32xf32>
    %321 = tpu.concatenate %230, %248, %266, %284, %302, %320 in 0 : vector<8x32xf32>, vector<8x32xf32>, vector<8x32xf32>, vector<8x32xf32>, vector<8x32xf32>, vector<8x32xf32> -> vector<48x32xf32>
    %cst_55 = arith.constant dense<0.000000e+00> : vector<48x8xf32>
    %322 = tpu.matmul %321, %201, %cst_55 {dimension_numbers = #tpu.dot_dimension_numbers<[1], [0], [0], [1], [0, 0, 1, 1], [], []>} : vector<48x32xf32>, vector<32x8xf32>, vector<48x8xf32> -> vector<48x8xf32>
    %c0_56 = arith.constant 0 : index
    %c0_57 = arith.constant 0 : index
    %323 = vector.load %arg8[%c0_56, %c0_57] : memref<1x8xf32, #tpu.memory_space<vmem>>, vector<1x8xf32>
    %324 = vector.broadcast %323 : vector<1x8xf32> to vector<48x8xf32>
    %325 = arith.addf %322, %324 : vector<48x8xf32>
    %c0_58 = arith.constant 0 : index
    %c0_59 = arith.constant 0 : index
    %326 = vector.load %arg9[%c0_58, %c0_59] : memref<48x8xf32, #tpu.memory_space<vmem>>, vector<48x8xf32>
    tpu.vector_store %arg9[%c0_58, %c0_59], %325 {strides = array<i32>} : memref<48x8xf32, #tpu.memory_space<vmem>>, vector<48x8xf32>,
    return
  }
}

</mosaic_0001>

<llo_original>
// kernel: seq2seq_forward.1
$region0: #{seq2seq_forward.1}
  #allocation0 [shape = 'u32[]', space=smem, size = 0x4, offset = 0x4, fixed_abs, tag = 'smem constant byte address 0x4 - core index']
  #allocation1 [shape = 'u32[72,128]{1,0:T(1,128)}', space=vmem, size = 0x9000, scoped, tag = 'internal scratch']
  %s0 = inlined_call_operand.vmem [shape: f32[80,8], index: 0, kind: input, shape index: {}]
  %s1 = inlined_call_operand.vmem [shape: f32[8,128], index: 1, kind: input, shape index: {}]
  %s2 = inlined_call_operand.vmem [shape: f32[32,128], index: 2, kind: input, shape index: {}]
  %s3 = inlined_call_operand.vmem [shape: f32[1,128], index: 3, kind: input, shape index: {}]
  %s4 = inlined_call_operand.vmem [shape: f32[8,128], index: 4, kind: input, shape index: {}]
  %s5 = inlined_call_operand.vmem [shape: f32[32,128], index: 5, kind: input, shape index: {}]
  %s6 = inlined_call_operand.vmem [shape: f32[1,128], index: 6, kind: input, shape index: {}]
  %s7 = inlined_call_operand.vmem [shape: f32[32,8], index: 7, kind: input, shape index: {}]
  %s8 = inlined_call_operand.vmem [shape: f32[1,8], index: 8, kind: input, shape index: {}]
  %s9 = inlined_call_operand.vmem [shape: f32[48,8], index: 9, kind: output, shape index: {}]
  %s10 = sld [smem:[#allocation0]]
  $region46: #{seq2seq_forward.1} parent=0
    _
  %s12 = ssub.s32 1, %s10
  %s13 = scalar_select 0, %s12, %s10
  // Predicated region
  $region2: #{seq2seq_forward.1} parent=0 // pred_check
    _
  $region3: #{seq2seq_forward.1} parent=0 // pred_check_branch
    %15 = sbr.rel (0) target = $region5
  $region4: #{seq2seq_forward.1} parent=0 // pred_region
    _
  $region5: #{seq2seq_forward.1} parent=0 // pred_fallthru
    _
  // Predicated region
  $region6: #{seq2seq_forward.1} parent=0 // pred_check
    _
  $region7: #{seq2seq_forward.1} parent=0 // pred_check_branch
    %17 = sbr.rel (0) target = $region9
  $region8: #{seq2seq_forward.1} parent=0 // pred_region
    _
  $region9: #{seq2seq_forward.1} parent=0 // pred_fallthru
    _
  // Predicated region
  $region10: #{seq2seq_forward.1} parent=0 // pred_check
    _
  $region11: #{seq2seq_forward.1} parent=0 // pred_check_branch
    %19 = sbr.rel (0) target = $region13
  $region12: #{seq2seq_forward.1} parent=0 // pred_region
    _
  $region13: #{seq2seq_forward.1} parent=0 // pred_fallthru
    _
  // Predicated region
  $region14: #{seq2seq_forward.1} parent=0 // pred_check
    _
  $region15: #{seq2seq_forward.1} parent=0 // pred_check_branch
    %21 = sbr.rel (0) target = $region17
  $region16: #{seq2seq_forward.1} parent=0 // pred_region
    _
  $region17: #{seq2seq_forward.1} parent=0 // pred_fallthru
    _
  // Predicated region
  $region18: #{seq2seq_forward.1} parent=0 // pred_check
    _
  $region19: #{seq2seq_forward.1} parent=0 // pred_check_branch
    %23 = sbr.rel (0) target = $region21
  $region20: #{seq2seq_forward.1} parent=0 // pred_region
    _
  $region21: #{seq2seq_forward.1} parent=0 // pred_fallthru
    _
  // Predicated region
  $region22: #{seq2seq_forward.1} parent=0 // pred_check
    _
  $region23: #{seq2seq_forward.1} parent=0 // pred_check_branch
    %25 = sbr.rel (0) target = $region25
  $region24: #{seq2seq_forward.1} parent=0 // pred_region
    _
  $region25: #{seq2seq_forward.1} parent=0 // pred_fallthru
    _
  // Predicated region
  $region26: #{seq2seq_forward.1} parent=0 // pred_check
    _
  $region27: #{seq2seq_forward.1} parent=0 // pred_check_branch
    %27 = sbr.rel (0) target = $region29
  $region28: #{seq2seq_forward.1} parent=0 // pred_region
    _
  $region29: #{seq2seq_forward.1} parent=0 // pred_fallthru
    _
  // Predicated region
  $region30: #{seq2seq_forward.1} parent=0 // pred_check
    _
  $region31: #{seq2seq_forward.1} parent=0 // pred_check_branch
    %29 = sbr.rel (0) target = $region33
  $region32: #{seq2seq_forward.1} parent=0 // pred_region
    _
  $region33: #{seq2seq_forward.1} parent=0 // pred_fallthru
    _
  // Predicated region
  $region34: #{seq2seq_forward.1} parent=0 // pred_check
    _
  $region35: #{seq2seq_forward.1} parent=0 // pred_check_branch
    %31 = sbr.rel (0) target = $region37
  $region36: #{seq2seq_forward.1} parent=0 // pred_region
    _
  $region37: #{seq2seq_forward.1} parent=0 // pred_fallthru
    _
  %v32 = vld [vmem:[%s0] sm:$0xff]
  %v33 = vld [vmem:[%s0 + $0x8] sm:$0xff]
  %v34 = vld [vmem:[%s0 + $0x10] sm:$0xff]
  %v35 = vld [vmem:[%s0 + $0x18] sm:$0xff]
  %v36 = vld [vmem:[%s0 + $0x20] sm:$0xff]
  %v37 = vld [vmem:[%s0 + $0x28] sm:$0xff]
  %v38 = vld [vmem:[%s0 + $0x30] sm:$0xff]
  %v39 = vld [vmem:[%s0 + $0x38] sm:$0xff]
  %v40 = vld [vmem:[%s0 + $0x40] sm:$0xff]
  %v41 = vld [vmem:[%s0 + $0x48] sm:$0xff]
  %v42 = vld [vmem:[%s1] sm:$0xff]
  %v43 = vld [vmem:[%s3] sm:$0x1]
  %v45 = vperm.slane %v43, 0
  %vm47 = vcmask 64512
  %v49 = vsel %vm47, %v32, 0
  %v52 = vsel %vm47, %v33, 0
  %v55 = vsel %vm47, %v34, 0
  %v58 = vsel %vm47, %v35, 0
  %v61 = vsel %vm47, %v36, 0
  %v64 = vsel %vm47, %v37, 0
  %v67 = vsel %vm47, %v38, 0
  %v70 = vsel %vm47, %v39, 0
  %v73 = vsel %vm47, %v40, 0
  %v76 = vsel %vm47, %v41, 0
  %78 = vmatpush.msra.mxu0 0.0
  %79 = vmatpush.msra.mxu0 0.0
  %80 = vmatpush.msra.mxu0 0.0
  %81 = vmatpush.msra.mxu0 0.0
  %82 = vmatpush.msra.mxu0 0.0
  %83 = vmatpush.msra.mxu0 0.0
  %84 = vmatpush.msra.mxu0 0.0
  %85 = vmatpush.msra.mxu0 0.0
  %86 = vmatpush.msra.mxu0 0.0
  %87 = vmatpush.msra.mxu0 0.0
  %88 = vmatpush.msra.mxu0 0.0
  %89 = vmatpush.msra.mxu0 0.0
  %90 = vmatpush.msra.mxu0 0.0
  %91 = vmatpush.msra.mxu0 0.0
  %92 = vmatpush.msra.mxu0 0.0
  %93 = vmatpush.msra.mxu0 %v42
  %94 = vmatmul.f32.gmra.mxu0 %v49
  %v95 = vpop.f32.mrf.mxu0
  %v96 = vadd.f32 %v45, %v95
  %97 = vmatmul.f32.gmra.mxu0 %v52
  %v98 = vpop.f32.mrf.mxu0
  %v99 = vadd.f32 %v45, %v98
  %100 = vmatmul.f32.gmra.mxu0 %v55
  %v101 = vpop.f32.mrf.mxu0
  %v102 = vadd.f32 %v45, %v101
  %103 = vmatmul.f32.gmra.mxu0 %v58
  %v104 = vpop.f32.mrf.mxu0
  %v105 = vadd.f32 %v45, %v104
  %106 = vmatmul.f32.gmra.mxu0 %v61
  %v107 = vpop.f32.mrf.mxu0
  %v108 = vadd.f32 %v45, %v107
  %109 = vmatmul.f32.gmra.mxu0 %v64
  %v110 = vpop.f32.mrf.mxu0
  %v111 = vadd.f32 %v45, %v110
  %112 = vmatmul.f32.gmra.mxu0 %v67
  %v113 = vpop.f32.mrf.mxu0
  %v114 = vadd.f32 %v45, %v113
  %115 = vmatmul.f32.gmra.mxu0 %v70
  %v116 = vpop.f32.mrf.mxu0
  %v117 = vadd.f32 %v45, %v116
  %118 = vmatmul.f32.gmra.mxu0 %v73
  %v119 = vpop.f32.mrf.mxu0
  %v120 = vadd.f32 %v45, %v119
  %121 = vmatmul.f32.gmra.mxu0 %v76
  %v122 = vpop.f32.mrf.mxu0
  %v123 = vadd.f32 %v45, %v122
  %124 = vdwg.mxu0
  %v125 = vld [vmem:[%s2] sm:$0xff]
  %v126 = vld [vmem:[%s2 + $0x8] sm:$0xff]
  %v127 = vld [vmem:[%s2 + $0x10] sm:$0xff]
  %v128 = vld [vmem:[%s2 + $0x18] sm:$0xff]
  %vm129 = vcmask 261120
  %v131 = vsel %vm129, 0.0, 0
  %133 = vmatpush.msra.mxu0 0.0
  %134 = vmatpush.msra.mxu0 0.0
  %135 = vmatpush.msra.mxu0 0.0
  %136 = vmatpush.msra.mxu0 0.0
  %137 = vmatpush.msra.mxu0 0.0
  %138 = vmatpush.msra.mxu0 0.0
  %139 = vmatpush.msra.mxu0 0.0
  %140 = vmatpush.msra.mxu0 0.0
  %141 = vmatpush.msra.mxu0 0.0
  %142 = vmatpush.msra.mxu0 0.0
  %143 = vmatpush.msra.mxu0 0.0
  %144 = vmatpush.msra.mxu0 0.0
  %145 = vmatpush.msra.mxu0 %v128
  %146 = vmatpush.msra.mxu0 %v127
  %147 = vmatpush.msra.mxu0 %v126
  %148 = vmatpush.msra.mxu0 %v125
  %149 = vmatmul.f32.gmra.mxu0 %v131
  %v150 = vpop.f32.mrf.mxu0
  %v151 = vadd.f32 0.0, %v150
  %152 = vdwg.mxu0
  %v153 = vadd.f32 %v96, %v151
  %v154 = vxor.u32 %v153, 2147483648
  %v155 = vmul.f32 %v154, 1.442695
  %v156 = vpow.pop %v155
  %v157 = vadd.f32 %v156, 1.0
  %v158 = vrcp.pop %v157
  %v159 = vmul.f32 %v157, %v158
  %v160 = vsub.f32 1.0, %v159
  %v161 = vmul.f32 %v158, %v160
  %v162 = vadd.f32 %v158, %v161
  %vm163 = vweird.f32 %v157
  %vm164 = vweird.f32 %v158
  %vm165 = vmor %vm163, %vm164
  %v166 = vsel %vm165, %v158, %v162
  %v167 = vand.u32 2147483647, %v157
  %vm168 = vcmp.eq.f32.partialorder %v167, 8.507059e+37
  %v169 = vand.u32 %v157, 2147483648
  %v170 = vor.u32 1.1754944e-38, %v169
  %v171 = vsel %vm168, %v170, %v166
  %v172 = vmul.f32 1.0, %v171
  %v173 = vtanh.pop %v153
  %v174 = vmul.f32 %v172, 0.0
  %176 = vrot.lane.b32.xlu0 %v173, 32
  %v177 = vpop.permute.xlu0 %176
  %v179 = vmul.f32 %v172, %v177
  %181 = vrot.lane.b32.xlu0 %v179, 32
  %v182 = vpop.permute.xlu0 %181
  %v184 = vadd.f32 %v174, %v182
  %v185 = vtanh.pop %v184
  %187 = vrot.lane.b32.xlu0 %v185, 32
  %v188 = vpop.permute.xlu0 %187
  %v190 = vmul.f32 %v172, %v188
  %192 = vrot.lane.b32.xlu0 %v190, 64
  %v193 = vpop.permute.xlu0 %192
  %v194 = vsel %vm129, %v193, 0
  %196 = vmatpush.msra.mxu0 0.0
  %197 = vmatpush.msra.mxu0 0.0
  %198 = vmatpush.msra.mxu0 0.0
  %199 = vmatpush.msra.mxu0 0.0
  %200 = vmatpush.msra.mxu0 0.0
  %201 = vmatpush.msra.mxu0 0.0
  %202 = vmatpush.msra.mxu0 0.0
  %203 = vmatpush.msra.mxu0 0.0
  %204 = vmatpush.msra.mxu0 0.0
  %205 = vmatpush.msra.mxu0 0.0
  %206 = vmatpush.msra.mxu0 0.0
  %207 = vmatpush.msra.mxu0 0.0
  %208 = vmatpush.msra.mxu0 %v128
  %209 = vmatpush.msra.mxu0 %v127
  %210 = vmatpush.msra.mxu0 %v126
  %211 = vmatpush.msra.mxu0 %v125
  %212 = vmatmul.f32.gmra.mxu0 %v194
  %v213 = vpop.f32.mrf.mxu0
  %v214 = vadd.f32 0.0, %v213
  %215 = vdwg.mxu0
  %v216 = vadd.f32 %v99, %v214
  %v217 = vxor.u32 %v216, 2147483648
  %v218 = vmul.f32 %v217, 1.442695
  %v219 = vpow.pop %v218
  %v220 = vadd.f32 %v219, 1.0
  %v221 = vrcp.pop %v220
  %v222 = vmul.f32 %v220, %v221
  %v223 = vsub.f32 1.0, %v222
  %v224 = vmul.f32 %v221, %v223
  %v225 = vadd.f32 %v221, %v224
  %vm226 = vweird.f32 %v220
  %vm227 = vweird.f32 %v221
  %vm228 = vmor %vm226, %vm227
  %v229 = vsel %vm228, %v221, %v225
  %v230 = vand.u32 2147483647, %v220
  %vm231 = vcmp.eq.f32.partialorder %v230, 8.507059e+37
  %v232 = vand.u32 %v220, 2147483648
  %v233 = vor.u32 1.1754944e-38, %v232
  %v234 = vsel %vm231, %v233, %v229
  %v235 = vmul.f32 1.0, %v234
  %v236 = vtanh.pop %v216
  %v237 = vmul.f32 %v235, %v184
  %239 = vrot.lane.b32.xlu0 %v236, 32
  %v240 = vpop.permute.xlu0 %239
  %v242 = vmul.f32 %v235, %v240
  %244 = vrot.lane.b32.xlu0 %v242, 32
  %v245 = vpop.permute.xlu0 %244
  %v247 = vadd.f32 %v237, %v245
  %v248 = vtanh.pop %v247
  %250 = vrot.lane.b32.xlu0 %v248, 32
  %v251 = vpop.permute.xlu0 %250
  %v253 = vmul.f32 %v235, %v251
  %255 = vrot.lane.b32.xlu0 %v253, 64
  %v256 = vpop.permute.xlu0 %255
  %v257 = vsel %vm129, %v256, 0
  %259 = vmatpush.msra.mxu0 0.0
  %260 = vmatpush.msra.mxu0 0.0
  %261 = vmatpush.msra.mxu0 0.0
  %262 = vmatpush.msra.mxu0 0.0
  %263 = vmatpush.msra.mxu0 0.0
  %264 = vmatpush.msra.mxu0 0.0
  %265 = vmatpush.msra.mxu0 0.0
  %266 = vmatpush.msra.mxu0 0.0
  %267 = vmatpush.msra.mxu0 0.0
  %268 = vmatpush.msra.mxu0 0.0
  %269 = vmatpush.msra.mxu0 0.0
  %270 = vmatpush.msra.mxu0 0.0
  %271 = vmatpush.msra.mxu0 %v128
  %272 = vmatpush.msra.mxu0 %v127
  %273 = vmatpush.msra.mxu0 %v126
  %274 = vmatpush.msra.mxu0 %v125
  %275 = vmatmul.f32.gmra.mxu0 %v257
  %v276 = vpop.f32.mrf.mxu0
  %v277 = vadd.f32 0.0, %v276
  %278 = vdwg.mxu0
  %v279 = vadd.f32 %v102, %v277
  %v280 = vxor.u32 %v279, 2147483648
  %v281 = vmul.f32 %v280, 1.442695
  %v282 = vpow.pop %v281
  %v283 = vadd.f32 %v282, 1.0
  %v284 = vrcp.pop %v283
  %v285 = vmul.f32 %v283, %v284
  %v286 = vsub.f32 1.0, %v285
  %v287 = vmul.f32 %v284, %v286
  %v288 = vadd.f32 %v284, %v287
  %vm289 = vweird.f32 %v283
  %vm290 = vweird.f32 %v284
  %vm291 = vmor %vm289, %vm290
  %v292 = vsel %vm291, %v284, %v288
  %v293 = vand.u32 2147483647, %v283
  %vm294 = vcmp.eq.f32.partialorder %v293, 8.507059e+37
  %v295 = vand.u32 %v283, 2147483648
  %v296 = vor.u32 1.1754944e-38, %v295
  %v297 = vsel %vm294, %v296, %v292
  %v298 = vmul.f32 1.0, %v297
  %v299 = vtanh.pop %v279
  %v300 = vmul.f32 %v298, %v247
  %302 = vrot.lane.b32.xlu0 %v299, 32
  %v303 = vpop.permute.xlu0 %302
  %v305 = vmul.f32 %v298, %v303
  %307 = vrot.lane.b32.xlu0 %v305, 32
  %v308 = vpop.permute.xlu0 %307
  %v310 = vadd.f32 %v300, %v308
  %v311 = vtanh.pop %v310
  %313 = vrot.lane.b32.xlu0 %v311, 32
  %v314 = vpop.permute.xlu0 %313
  %v316 = vmul.f32 %v298, %v314
  %318 = vrot.lane.b32.xlu0 %v316, 64
  %v319 = vpop.permute.xlu0 %318
  %v320 = vsel %vm129, %v319, 0
  %322 = vmatpush.msra.mxu0 0.0
  %323 = vmatpush.msra.mxu0 0.0
  %324 = vmatpush.msra.mxu0 0.0
  %325 = vmatpush.msra.mxu0 0.0
  %326 = vmatpush.msra.mxu0 0.0
  %327 = vmatpush.msra.mxu0 0.0
  %328 = vmatpush.msra.mxu0 0.0
  %329 = vmatpush.msra.mxu0 0.0
  %330 = vmatpush.msra.mxu0 0.0
  %331 = vmatpush.msra.mxu0 0.0
  %332 = vmatpush.msra.mxu0 0.0
  %333 = vmatpush.msra.mxu0 0.0
  %334 = vmatpush.msra.mxu0 %v128
  %335 = vmatpush.msra.mxu0 %v127
  %336 = vmatpush.msra.mxu0 %v126
  %337 = vmatpush.msra.mxu0 %v125
  %338 = vmatmul.f32.gmra.mxu0 %v320
  %v339 = vpop.f32.mrf.mxu0
  %v340 = vadd.f32 0.0, %v339
  %341 = vdwg.mxu0
  %v342 = vadd.f32 %v105, %v340
  %v343 = vxor.u32 %v342, 2147483648
  %v344 = vmul.f32 %v343, 1.442695
  %v345 = vpow.pop %v344
  %v346 = vadd.f32 %v345, 1.0
  %v347 = vrcp.pop %v346
  %v348 = vmul.f32 %v346, %v347
  %v349 = vsub.f32 1.0, %v348
  %v350 = vmul.f32 %v347, %v349
  %v351 = vadd.f32 %v347, %v350
  %vm352 = vweird.f32 %v346
  %vm353 = vweird.f32 %v347
  %vm354 = vmor %vm352, %vm353
  %v355 = vsel %vm354, %v347, %v351
  %v356 = vand.u32 2147483647, %v346
  %vm357 = vcmp.eq.f32.partialorder %v356, 8.507059e+37
  %v358 = vand.u32 %v346, 2147483648
  %v359 = vor.u32 1.1754944e-38, %v358
  %v360 = vsel %vm357, %v359, %v355
  %v361 = vmul.f32 1.0, %v360
  %v362 = vtanh.pop %v342
  %v363 = vmul.f32 %v361, %v310
  %365 = vrot.lane.b32.xlu0 %v362, 32
  %v366 = vpop.permute.xlu0 %365
  %v368 = vmul.f32 %v361, %v366
  %370 = vrot.lane.b32.xlu0 %v368, 32
  %v371 = vpop.permute.xlu0 %370
  %v373 = vadd.f32 %v363, %v371
  %v374 = vtanh.pop %v373
  %376 = vrot.lane.b32.xlu0 %v374, 32
  %v377 = vpop.permute.xlu0 %376
  %v379 = vmul.f32 %v361, %v377
  %381 = vrot.lane.b32.xlu0 %v379, 64
  %v382 = vpop.permute.xlu0 %381
  %v383 = vsel %vm129, %v382, 0
  %385 = vmatpush.msra.mxu0 0.0
  %386 = vmatpush.msra.mxu0 0.0
  %387 = vmatpush.msra.mxu0 0.0
  %388 = vmatpush.msra.mxu0 0.0
  %389 = vmatpush.msra.mxu0 0.0
  %390 = vmatpush.msra.mxu0 0.0
  %391 = vmatpush.msra.mxu0 0.0
  %392 = vmatpush.msra.mxu0 0.0
  %393 = vmatpush.msra.mxu0 0.0
  %394 = vmatpush.msra.mxu0 0.0
  %395 = vmatpush.msra.mxu0 0.0
  %396 = vmatpush.msra.mxu0 0.0
  %397 = vmatpush.msra.mxu0 %v128
  %398 = vmatpush.msra.mxu0 %v127
  %399 = vmatpush.msra.mxu0 %v126
  %400 = vmatpush.msra.mxu0 %v125
  %401 = vmatmul.f32.gmra.mxu0 %v383
  %v402 = vpop.f32.mrf.mxu0
  %v403 = vadd.f32 0.0, %v402
  %404 = vdwg.mxu0
  %v405 = vadd.f32 %v108, %v403
  %v406 = vxor.u32 %v405, 2147483648
  %v407 = vmul.f32 %v406, 1.442695
  %v408 = vpow.pop %v407
  %v409 = vadd.f32 %v408, 1.0
  %v410 = vrcp.pop %v409
  %v411 = vmul.f32 %v409, %v410
  %v412 = vsub.f32 1.0, %v411
  %v413 = vmul.f32 %v410, %v412
  %v414 = vadd.f32 %v410, %v413
  %vm415 = vweird.f32 %v409
  %vm416 = vweird.f32 %v410
  %vm417 = vmor %vm415, %vm416
  %v418 = vsel %vm417, %v410, %v414
  %v419 = vand.u32 2147483647, %v409
  %vm420 = vcmp.eq.f32.partialorder %v419, 8.507059e+37
  %v421 = vand.u32 %v409, 2147483648
  %v422 = vor.u32 1.1754944e-38, %v421
  %v423 = vsel %vm420, %v422, %v418
  %v424 = vmul.f32 1.0, %v423
  %v425 = vtanh.pop %v405
  %v426 = vmul.f32 %v424, %v373
  %428 = vrot.lane.b32.xlu0 %v425, 32
  %v429 = vpop.permute.xlu0 %428
  %v431 = vmul.f32 %v424, %v429
  %433 = vrot.lane.b32.xlu0 %v431, 32
  %v434 = vpop.permute.xlu0 %433
  %v436 = vadd.f32 %v426, %v434
  %v437 = vtanh.pop %v436
  %439 = vrot.lane.b32.xlu0 %v437, 32
  %v440 = vpop.permute.xlu0 %439
  %v442 = vmul.f32 %v424, %v440
  %444 = vrot.lane.b32.xlu0 %v442, 64
  %v445 = vpop.permute.xlu0 %444
  %v446 = vsel %vm129, %v445, 0
  %448 = vmatpush.msra.mxu0 0.0
  %449 = vmatpush.msra.mxu0 0.0
  %450 = vmatpush.msra.mxu0 0.0
  %451 = vmatpush.msra.mxu0 0.0
  %452 = vmatpush.msra.mxu0 0.0
  %453 = vmatpush.msra.mxu0 0.0
  %454 = vmatpush.msra.mxu0 0.0
  %455 = vmatpush.msra.mxu0 0.0
  %456 = vmatpush.msra.mxu0 0.0
  %457 = vmatpush.msra.mxu0 0.0
  %458 = vmatpush.msra.mxu0 0.0
  %459 = vmatpush.msra.mxu0 0.0
  %460 = vmatpush.msra.mxu0 %v128
  %461 = vmatpush.msra.mxu0 %v127
  %462 = vmatpush.msra.mxu0 %v126
  %463 = vmatpush.msra.mxu0 %v125
  %464 = vmatmul.f32.gmra.mxu0 %v446
  %v465 = vpop.f32.mrf.mxu0
  %v466 = vadd.f32 0.0, %v465
  %467 = vdwg.mxu0
  %v468 = vadd.f32 %v111, %v466
  %v469 = vxor.u32 %v468, 2147483648
  %v470 = vmul.f32 %v469, 1.442695
  %v471 = vpow.pop %v470
  %v472 = vadd.f32 %v471, 1.0
  %v473 = vrcp.pop %v472
  %v474 = vmul.f32 %v472, %v473
  %v475 = vsub.f32 1.0, %v474
  %v476 = vmul.f32 %v473, %v475
  %v477 = vadd.f32 %v473, %v476
  %vm478 = vweird.f32 %v472
  %vm479 = vweird.f32 %v473
  %vm480 = vmor %vm478, %vm479
  %v481 = vsel %vm480, %v473, %v477
  %v482 = vand.u32 2147483647, %v472
  %vm483 = vcmp.eq.f32.partialorder %v482, 8.507059e+37
  %v484 = vand.u32 %v472, 2147483648
  %v485 = vor.u32 1.1754944e-38, %v484
  %v486 = vsel %vm483, %v485, %v481
  %v487 = vmul.f32 1.0, %v486
  %v488 = vtanh.pop %v468
  %v489 = vmul.f32 %v487, %v436
  %491 = vrot.lane.b32.xlu0 %v488, 32
  %v492 = vpop.permute.xlu0 %491
  %v494 = vmul.f32 %v487, %v492
  %496 = vrot.lane.b32.xlu0 %v494, 32
  %v497 = vpop.permute.xlu0 %496
  %v499 = vadd.f32 %v489, %v497
  %v500 = vtanh.pop %v499
  %502 = vrot.lane.b32.xlu0 %v500, 32
  %v503 = vpop.permute.xlu0 %502
  %v505 = vmul.f32 %v487, %v503
  %507 = vrot.lane.b32.xlu0 %v505, 64
  %v508 = vpop.permute.xlu0 %507
  %v509 = vsel %vm129, %v508, 0
  %511 = vmatpush.msra.mxu0 0.0
  %512 = vmatpush.msra.mxu0 0.0
  %513 = vmatpush.msra.mxu0 0.0
  %514 = vmatpush.msra.mxu0 0.0
  %515 = vmatpush.msra.mxu0 0.0
  %516 = vmatpush.msra.mxu0 0.0
  %517 = vmatpush.msra.mxu0 0.0
  %518 = vmatpush.msra.mxu0 0.0
  %519 = vmatpush.msra.mxu0 0.0
  %520 = vmatpush.msra.mxu0 0.0
  %521 = vmatpush.msra.mxu0 0.0
  %522 = vmatpush.msra.mxu0 0.0
  %523 = vmatpush.msra.mxu0 %v128
  %524 = vmatpush.msra.mxu0 %v127
  %525 = vmatpush.msra.mxu0 %v126
  %526 = vmatpush.msra.mxu0 %v125
  %527 = vmatmul.f32.gmra.mxu0 %v509
  %v528 = vpop.f32.mrf.mxu0
  %v529 = vadd.f32 0.0, %v528
  %530 = vdwg.mxu0
  %v531 = vadd.f32 %v114, %v529
  %v532 = vxor.u32 %v531, 2147483648
  %v533 = vmul.f32 %v532, 1.442695
  %v534 = vpow.pop %v533
  %v535 = vadd.f32 %v534, 1.0
  %v536 = vrcp.pop %v535
  %v537 = vmul.f32 %v535, %v536
  %v538 = vsub.f32 1.0, %v537
  %v539 = vmul.f32 %v536, %v538
  %v540 = vadd.f32 %v536, %v539
  %vm541 = vweird.f32 %v535
  %vm542 = vweird.f32 %v536
  %vm543 = vmor %vm541, %vm542
  %v544 = vsel %vm543, %v536, %v540
  %v545 = vand.u32 2147483647, %v535
  %vm546 = vcmp.eq.f32.partialorder %v545, 8.507059e+37
  %v547 = vand.u32 %v535, 2147483648
  %v548 = vor.u32 1.1754944e-38, %v547
  %v549 = vsel %vm546, %v548, %v544
  %v550 = vmul.f32 1.0, %v549
  %v551 = vtanh.pop %v531
  %v552 = vmul.f32 %v550, %v499
  %554 = vrot.lane.b32.xlu0 %v551, 32
  %v555 = vpop.permute.xlu0 %554
  %v557 = vmul.f32 %v550, %v555
  %559 = vrot.lane.b32.xlu0 %v557, 32
  %v560 = vpop.permute.xlu0 %559
  %v562 = vadd.f32 %v552, %v560
  %v563 = vtanh.pop %v562
  %565 = vrot.lane.b32.xlu0 %v563, 32
  %v566 = vpop.permute.xlu0 %565
  %v568 = vmul.f32 %v550, %v566
  %570 = vrot.lane.b32.xlu0 %v568, 64
  %v571 = vpop.permute.xlu0 %570
  %v572 = vsel %vm129, %v571, 0
  %574 = vmatpush.msra.mxu0 0.0
  %575 = vmatpush.msra.mxu0 0.0
  %576 = vmatpush.msra.mxu0 0.0
  %577 = vmatpush.msra.mxu0 0.0
  %578 = vmatpush.msra.mxu0 0.0
  %579 = vmatpush.msra.mxu0 0.0
  %580 = vmatpush.msra.mxu0 0.0
  %581 = vmatpush.msra.mxu0 0.0
  %582 = vmatpush.msra.mxu0 0.0
  %583 = vmatpush.msra.mxu0 0.0
  %584 = vmatpush.msra.mxu0 0.0
  %585 = vmatpush.msra.mxu0 0.0
  %586 = vmatpush.msra.mxu0 %v128
  %587 = vmatpush.msra.mxu0 %v127
  %588 = vmatpush.msra.mxu0 %v126
  %589 = vmatpush.msra.mxu0 %v125
  %590 = vmatmul.f32.gmra.mxu0 %v572
  %v591 = vpop.f32.mrf.mxu0
  %v592 = vadd.f32 0.0, %v591
  %593 = vdwg.mxu0
  %v594 = vadd.f32 %v117, %v592
  %v595 = vxor.u32 %v594, 2147483648
  %v596 = vmul.f32 %v595, 1.442695
  %v597 = vpow.pop %v596
  %v598 = vadd.f32 %v597, 1.0
  %v599 = vrcp.pop %v598
  %v600 = vmul.f32 %v598, %v599
  %v601 = vsub.f32 1.0, %v600
  %v602 = vmul.f32 %v599, %v601
  %v603 = vadd.f32 %v599, %v602
  %vm604 = vweird.f32 %v598
  %vm605 = vweird.f32 %v599
  %vm606 = vmor %vm604, %vm605
  %v607 = vsel %vm606, %v599, %v603
  %v608 = vand.u32 2147483647, %v598
  %vm609 = vcmp.eq.f32.partialorder %v608, 8.507059e+37
  %v610 = vand.u32 %v598, 2147483648
  %v611 = vor.u32 1.1754944e-38, %v610
  %v612 = vsel %vm609, %v611, %v607
  %v613 = vmul.f32 1.0, %v612
  %v614 = vtanh.pop %v594
  %v615 = vmul.f32 %v613, %v562
  %617 = vrot.lane.b32.xlu0 %v614, 32
  %v618 = vpop.permute.xlu0 %617
  %v620 = vmul.f32 %v613, %v618
  %622 = vrot.lane.b32.xlu0 %v620, 32
  %v623 = vpop.permute.xlu0 %622
  %v625 = vadd.f32 %v615, %v623
  %v626 = vtanh.pop %v625
  %628 = vrot.lane.b32.xlu0 %v626, 32
  %v629 = vpop.permute.xlu0 %628
  %v631 = vmul.f32 %v613, %v629
  %633 = vrot.lane.b32.xlu0 %v631, 64
  %v634 = vpop.permute.xlu0 %633
  %v635 = vsel %vm129, %v634, 0
  %637 = vmatpush.msra.mxu0 0.0
  %638 = vmatpush.msra.mxu0 0.0
  %639 = vmatpush.msra.mxu0 0.0
  %640 = vmatpush.msra.mxu0 0.0
  %641 = vmatpush.msra.mxu0 0.0
  %642 = vmatpush.msra.mxu0 0.0
  %643 = vmatpush.msra.mxu0 0.0
  %644 = vmatpush.msra.mxu0 0.0
  %645 = vmatpush.msra.mxu0 0.0
  %646 = vmatpush.msra.mxu0 0.0
  %647 = vmatpush.msra.mxu0 0.0
  %648 = vmatpush.msra.mxu0 0.0
  %649 = vmatpush.msra.mxu0 %v128
  %650 = vmatpush.msra.mxu0 %v127
  %651 = vmatpush.msra.mxu0 %v126
  %652 = vmatpush.msra.mxu0 %v125
  %653 = vmatmul.f32.gmra.mxu0 %v635
  %v654 = vpop.f32.mrf.mxu0
  %v655 = vadd.f32 0.0, %v654
  %656 = vdwg.mxu0
  %v657 = vadd.f32 %v120, %v655
  %v658 = vxor.u32 %v657, 2147483648
  %v659 = vmul.f32 %v658, 1.442695
  %v660 = vpow.pop %v659
  %v661 = vadd.f32 %v660, 1.0
  %v662 = vrcp.pop %v661
  %v663 = vmul.f32 %v661, %v662
  %v664 = vsub.f32 1.0, %v663
  %v665 = vmul.f32 %v662, %v664
  %v666 = vadd.f32 %v662, %v665
  %vm667 = vweird.f32 %v661
  %vm668 = vweird.f32 %v662
  %vm669 = vmor %vm667, %vm668
  %v670 = vsel %vm669, %v662, %v666
  %v671 = vand.u32 2147483647, %v661
  %vm672 = vcmp.eq.f32.partialorder %v671, 8.507059e+37
  %v673 = vand.u32 %v661, 2147483648
  %v674 = vor.u32 1.1754944e-38, %v673
  %v675 = vsel %vm672, %v674, %v670
  %v676 = vmul.f32 1.0, %v675
  %v677 = vtanh.pop %v657
  %v678 = vmul.f32 %v676, %v625
  %680 = vrot.lane.b32.xlu0 %v677, 32
  %v681 = vpop.permute.xlu0 %680
  %v683 = vmul.f32 %v676, %v681
  %685 = vrot.lane.b32.xlu0 %v683, 32
  %v686 = vpop.permute.xlu0 %685
  %v688 = vadd.f32 %v678, %v686
  %v689 = vtanh.pop %v688
  %691 = vrot.lane.b32.xlu0 %v689, 32
  %v692 = vpop.permute.xlu0 %691
  %v694 = vmul.f32 %v676, %v692
  %696 = vrot.lane.b32.xlu0 %v694, 64
  %v697 = vpop.permute.xlu0 %696
  %v698 = vsel %vm129, %v697, 0
  %700 = vmatpush.msra.mxu0 0.0
  %701 = vmatpush.msra.mxu0 0.0
  %702 = vmatpush.msra.mxu0 0.0
  %703 = vmatpush.msra.mxu0 0.0
  %704 = vmatpush.msra.mxu0 0.0
  %705 = vmatpush.msra.mxu0 0.0
  %706 = vmatpush.msra.mxu0 0.0
  %707 = vmatpush.msra.mxu0 0.0
  %708 = vmatpush.msra.mxu0 0.0
  %709 = vmatpush.msra.mxu0 0.0
  %710 = vmatpush.msra.mxu0 0.0
  %711 = vmatpush.msra.mxu0 0.0
  %712 = vmatpush.msra.mxu0 %v128
  %713 = vmatpush.msra.mxu0 %v127
  %714 = vmatpush.msra.mxu0 %v126
  %715 = vmatpush.msra.mxu0 %v125
  %716 = vmatmul.f32.gmra.mxu0 %v698
  %v717 = vpop.f32.mrf.mxu0
  %v718 = vadd.f32 0.0, %v717
  %719 = vdwg.mxu0
  %v720 = vadd.f32 %v123, %v718
  %v721 = vxor.u32 %v720, 2147483648
  %v722 = vmul.f32 %v721, 1.442695
  %v723 = vpow.pop %v722
  %v724 = vadd.f32 %v723, 1.0
  %v725 = vrcp.pop %v724
  %v726 = vmul.f32 %v724, %v725
  %v727 = vsub.f32 1.0, %v726
  %v728 = vmul.f32 %v725, %v727
  %v729 = vadd.f32 %v725, %v728
  %vm730 = vweird.f32 %v724
  %vm731 = vweird.f32 %v725
  %vm732 = vmor %vm730, %vm731
  %v733 = vsel %vm732, %v725, %v729
  %v734 = vand.u32 2147483647, %v724
  %vm735 = vcmp.eq.f32.partialorder %v734, 8.507059e+37
  %v736 = vand.u32 %v724, 2147483648
  %v737 = vor.u32 1.1754944e-38, %v736
  %v738 = vsel %vm735, %v737, %v733
  %v739 = vmul.f32 1.0, %v738
  %v740 = vtanh.pop %v720
  %v741 = vmul.f32 %v739, %v688
  %743 = vrot.lane.b32.xlu0 %v740, 32
  %v744 = vpop.permute.xlu0 %743
  %v746 = vmul.f32 %v739, %v744
  %748 = vrot.lane.b32.xlu0 %v746, 32
  %v749 = vpop.permute.xlu0 %748
  %v751 = vadd.f32 %v741, %v749
  %v752 = vtanh.pop %v751
  %754 = vrot.lane.b32.xlu0 %v752, 32
  %v755 = vpop.permute.xlu0 %754
  %v757 = vmul.f32 %v739, %v755
  %v758 = vld [vmem:[%s4] sm:$0xff]
  %v759 = vld [vmem:[%s5] sm:$0xff]
  %v760 = vld [vmem:[%s5 + $0x8] sm:$0xff]
  %v761 = vld [vmem:[%s5 + $0x10] sm:$0xff]
  %v762 = vld [vmem:[%s5 + $0x18] sm:$0xff]
  %v763 = vld [vmem:[%s7] sm:$0xff]
  %v764 = vld [vmem:[%s7 + $0x8] sm:$0xff]
  %v765 = vld [vmem:[%s7 + $0x10] sm:$0xff]
  %v766 = vld [vmem:[%s7 + $0x18] sm:$0xff]
  %v768 = vsel %vm47, %v763, 0
  %v771 = vsel %vm47, %v764, 0
  %v774 = vsel %vm47, %v765, 0
  %v777 = vsel %vm47, %v766, 0
  %779 = vmatpush.msra.mxu0 0.0
  %780 = vmatpush.msra.mxu0 0.0
  %781 = vmatpush.msra.mxu0 0.0
  %782 = vmatpush.msra.mxu0 0.0
  %783 = vmatpush.msra.mxu0 0.0
  %784 = vmatpush.msra.mxu0 0.0
  %785 = vmatpush.msra.mxu0 0.0
  %786 = vmatpush.msra.mxu0 0.0
  %787 = vmatpush.msra.mxu0 0.0
  %788 = vmatpush.msra.mxu0 0.0
  %789 = vmatpush.msra.mxu0 0.0
  %790 = vmatpush.msra.mxu0 0.0
  %791 = vmatpush.msra.mxu0 0.0
  %792 = vmatpush.msra.mxu0 0.0
  %793 = vmatpush.msra.mxu0 0.0
  %794 = vmatpush.msra.mxu0 %v758
  %795 = vmatmul.f32.gmra.mxu0 %v768
  %v796 = vpop.f32.mrf.mxu0
  %v797 = vadd.f32 0.0, %v796
  %798 = vmatmul.f32.gmra.mxu0 %v771
  %v799 = vpop.f32.mrf.mxu0
  %v800 = vadd.f32 0.0, %v799
  %801 = vmatmul.f32.gmra.mxu0 %v774
  %v802 = vpop.f32.mrf.mxu0
  %v803 = vadd.f32 0.0, %v802
  %804 = vmatmul.f32.gmra.mxu0 %v777
  %v805 = vpop.f32.mrf.mxu0
  %v806 = vadd.f32 0.0, %v805
  %807 = vdwg.mxu0
  %v808 = vadd.f32 %v759, %v797
  %v809 = vadd.f32 %v760, %v800
  %v810 = vadd.f32 %v761, %v803
  %v811 = vadd.f32 %v762, %v806
  %v812 = vld [vmem:[%s6] sm:$0x1]
  %v814 = vperm.slane %v812, 0
  %v816 = vld [vmem:[%s8] sm:$0x1]
  %v818 = vsel %vm47, %v816, 0
  %820 = vmatpush.msra.mxu0 0.0
  %821 = vmatpush.msra.mxu0 0.0
  %822 = vmatpush.msra.mxu0 0.0
  %823 = vmatpush.msra.mxu0 0.0
  %824 = vmatpush.msra.mxu0 0.0
  %825 = vmatpush.msra.mxu0 0.0
  %826 = vmatpush.msra.mxu0 0.0
  %827 = vmatpush.msra.mxu0 0.0
  %828 = vmatpush.msra.mxu0 0.0
  %829 = vmatpush.msra.mxu0 0.0
  %830 = vmatpush.msra.mxu0 0.0
  %831 = vmatpush.msra.mxu0 0.0
  %832 = vmatpush.msra.mxu0 0.0
  %833 = vmatpush.msra.mxu0 0.0
  %834 = vmatpush.msra.mxu0 0.0
  %835 = vmatpush.msra.mxu0 %v758
  %836 = vmatmul.f32.gmra.mxu0 %v818
  %v837 = vpop.f32.mrf.mxu0
  %v838 = vadd.f32 0.0, %v837
  %839 = vdwg.mxu0
  %v840 = vadd.f32 %v812, %v838
  %v842 = vperm.slane %v840, 0
  %845 = vrot.lane.b32.xlu0 %v757, 64
  %v846 = vpop.permute.xlu0 %845
  %v847 = vsel %vm129, %v846, 0
  %849 = vmatpush.msra.mxu0 0.0
  %850 = vmatpush.msra.mxu0 0.0
  %851 = vmatpush.msra.mxu0 0.0
  %852 = vmatpush.msra.mxu0 0.0
  %853 = vmatpush.msra.mxu0 0.0
  %854 = vmatpush.msra.mxu0 0.0
  %855 = vmatpush.msra.mxu0 0.0
  %856 = vmatpush.msra.mxu0 0.0
  %857 = vmatpush.msra.mxu0 0.0
  %858 = vmatpush.msra.mxu0 0.0
  %859 = vmatpush.msra.mxu0 0.0
  %860 = vmatpush.msra.mxu0 0.0
  %861 = vmatpush.msra.mxu0 %v762
  %862 = vmatpush.msra.mxu0 %v761
  %863 = vmatpush.msra.mxu0 %v760
  %864 = vmatpush.msra.mxu0 %v759
  %865 = vmatmul.f32.gmra.mxu0 %v847
  %v866 = vpop.f32.mrf.mxu0
  %v867 = vadd.f32 %v814, %v866
  %868 = vdwg.mxu0
  %v869 = vxor.u32 %v867, 2147483648
  %v870 = vmul.f32 %v869, 1.442695
  %v871 = vpow.pop %v870
  %v872 = vadd.f32 %v871, 1.0
  %v873 = vrcp.pop %v872
  %v874 = vmul.f32 %v872, %v873
  %v875 = vsub.f32 1.0, %v874
  %v876 = vmul.f32 %v873, %v875
  %v877 = vadd.f32 %v873, %v876
  %vm878 = vweird.f32 %v872
  %vm879 = vweird.f32 %v873
  %vm880 = vmor %vm878, %vm879
  %v881 = vsel %vm880, %v873, %v877
  %v882 = vand.u32 2147483647, %v872
  %vm883 = vcmp.eq.f32.partialorder %v882, 8.507059e+37
  %v884 = vand.u32 %v872, 2147483648
  %v885 = vor.u32 1.1754944e-38, %v884
  %v886 = vsel %vm883, %v885, %v881
  %v887 = vmul.f32 1.0, %v886
  %v888 = vtanh.pop %v867
  %v889 = vmul.f32 %v887, %v751
  %891 = vrot.lane.b32.xlu0 %v888, 32
  %v892 = vpop.permute.xlu0 %891
  %v894 = vmul.f32 %v887, %v892
  %896 = vrot.lane.b32.xlu0 %v894, 32
  %v897 = vpop.permute.xlu0 %896
  %v899 = vadd.f32 %v889, %v897
  %v900 = vtanh.pop %v899
  %902 = vrot.lane.b32.xlu0 %v900, 32
  %v903 = vpop.permute.xlu0 %902
  %v905 = vmul.f32 %v887, %v903
  %907 = vrot.lane.b32.xlu0 %v905, 64
  %v908 = vpop.permute.xlu0 %907
  %v909 = vsel %vm129, %v908, 0
  %911 = vmatpush.msra.mxu0 0.0
  %912 = vmatpush.msra.mxu0 0.0
  %913 = vmatpush.msra.mxu0 0.0
  %914 = vmatpush.msra.mxu0 0.0
  %915 = vmatpush.msra.mxu0 0.0
  %916 = vmatpush.msra.mxu0 0.0
  %917 = vmatpush.msra.mxu0 0.0
  %918 = vmatpush.msra.mxu0 0.0
  %919 = vmatpush.msra.mxu0 0.0
  %920 = vmatpush.msra.mxu0 0.0
  %921 = vmatpush.msra.mxu0 0.0
  %922 = vmatpush.msra.mxu0 0.0
  %923 = vmatpush.msra.mxu0 %v811
  %924 = vmatpush.msra.mxu0 %v810
  %925 = vmatpush.msra.mxu0 %v809
  %926 = vmatpush.msra.mxu0 %v808
  %927 = vmatmul.f32.gmra.mxu0 %v909
  %v928 = vpop.f32.mrf.mxu0
  %v929 = vadd.f32 %v842, %v928
  %930 = vdwg.mxu0
  %v931 = vxor.u32 %v929, 2147483648
  %v932 = vmul.f32 %v931, 1.442695
  %v933 = vpow.pop %v932
  %v934 = vadd.f32 %v933, 1.0
  %v935 = vrcp.pop %v934
  %v936 = vmul.f32 %v934, %v935
  %v937 = vsub.f32 1.0, %v936
  %v938 = vmul.f32 %v935, %v937
  %v939 = vadd.f32 %v935, %v938
  %vm940 = vweird.f32 %v934
  %vm941 = vweird.f32 %v935
  %vm942 = vmor %vm940, %vm941
  %v943 = vsel %vm942, %v935, %v939
  %v944 = vand.u32 2147483647, %v934
  %vm945 = vcmp.eq.f32.partialorder %v944, 8.507059e+37
  %v946 = vand.u32 %v934, 2147483648
  %v947 = vor.u32 1.1754944e-38, %v946
  %v948 = vsel %vm945, %v947, %v943
  %v949 = vmul.f32 1.0, %v948
  %v950 = vtanh.pop %v929
  %v951 = vmul.f32 %v949, %v899
  %953 = vrot.lane.b32.xlu0 %v950, 32
  %v954 = vpop.permute.xlu0 %953
  %v956 = vmul.f32 %v949, %v954
  %958 = vrot.lane.b32.xlu0 %v956, 32
  %v959 = vpop.permute.xlu0 %958
  %v961 = vadd.f32 %v951, %v959
  %v962 = vtanh.pop %v961
  %964 = vrot.lane.b32.xlu0 %v962, 32
  %v965 = vpop.permute.xlu0 %964
  %v967 = vmul.f32 %v949, %v965
  %969 = vrot.lane.b32.xlu0 %v967, 64
  %v970 = vpop.permute.xlu0 %969
  %v971 = vsel %vm129, %v970, 0
  %973 = vmatpush.msra.mxu0 0.0
  %974 = vmatpush.msra.mxu0 0.0
  %975 = vmatpush.msra.mxu0 0.0
  %976 = vmatpush.msra.mxu0 0.0
  %977 = vmatpush.msra.mxu0 0.0
  %978 = vmatpush.msra.mxu0 0.0
  %979 = vmatpush.msra.mxu0 0.0
  %980 = vmatpush.msra.mxu0 0.0
  %981 = vmatpush.msra.mxu0 0.0
  %982 = vmatpush.msra.mxu0 0.0
  %983 = vmatpush.msra.mxu0 0.0
  %984 = vmatpush.msra.mxu0 0.0
  %985 = vmatpush.msra.mxu0 %v811
  %986 = vmatpush.msra.mxu0 %v810
  %987 = vmatpush.msra.mxu0 %v809
  %988 = vmatpush.msra.mxu0 %v808
  %989 = vmatmul.f32.gmra.mxu0 %v971
  %v990 = vpop.f32.mrf.mxu0
  %v991 = vadd.f32 %v842, %v990
  %992 = vdwg.mxu0
  %v993 = vxor.u32 %v991, 2147483648
  %v994 = vmul.f32 %v993, 1.442695
  %v995 = vpow.pop %v994
  %v996 = vadd.f32 %v995, 1.0
  %v997 = vrcp.pop %v996
  %v998 = vmul.f32 %v996, %v997
  %v999 = vsub.f32 1.0, %v998
  %v1000 = vmul.f32 %v997, %v999
  %v1001 = vadd.f32 %v997, %v1000
  %vm1002 = vweird.f32 %v996
  %vm1003 = vweird.f32 %v997
  %vm1004 = vmor %vm1002, %vm1003
  %v1005 = vsel %vm1004, %v997, %v1001
  %v1006 = vand.u32 2147483647, %v996
  %vm1007 = vcmp.eq.f32.partialorder %v1006, 8.507059e+37
  %v1008 = vand.u32 %v996, 2147483648
  %v1009 = vor.u32 1.1754944e-38, %v1008
  %v1010 = vsel %vm1007, %v1009, %v1005
  %v1011 = vmul.f32 1.0, %v1010
  %v1012 = vtanh.pop %v991
  %v1013 = vmul.f32 %v1011, %v961
  %1015 = vrot.lane.b32.xlu0 %v1012, 32
  %v1016 = vpop.permute.xlu0 %1015
  %v1018 = vmul.f32 %v1011, %v1016
  %1020 = vrot.lane.b32.xlu0 %v1018, 32
  %v1021 = vpop.permute.xlu0 %1020
  %v1023 = vadd.f32 %v1013, %v1021
  %v1024 = vtanh.pop %v1023
  %1026 = vrot.lane.b32.xlu0 %v1024, 32
  %v1027 = vpop.permute.xlu0 %1026
  %v1029 = vmul.f32 %v1011, %v1027
  %1031 = vrot.lane.b32.xlu0 %v1029, 64
  %v1032 = vpop.permute.xlu0 %1031
  %v1033 = vsel %vm129, %v1032, 0
  %1035 = vmatpush.msra.mxu0 0.0
  %1036 = vmatpush.msra.mxu0 0.0
  %1037 = vmatpush.msra.mxu0 0.0
  %1038 = vmatpush.msra.mxu0 0.0
  %1039 = vmatpush.msra.mxu0 0.0
  %1040 = vmatpush.msra.mxu0 0.0
  %1041 = vmatpush.msra.mxu0 0.0
  %1042 = vmatpush.msra.mxu0 0.0
  %1043 = vmatpush.msra.mxu0 0.0
  %1044 = vmatpush.msra.mxu0 0.0
  %1045 = vmatpush.msra.mxu0 0.0
  %1046 = vmatpush.msra.mxu0 0.0
  %1047 = vmatpush.msra.mxu0 %v811
  %1048 = vmatpush.msra.mxu0 %v810
  %1049 = vmatpush.msra.mxu0 %v809
  %1050 = vmatpush.msra.mxu0 %v808
  %1051 = vmatmul.f32.gmra.mxu0 %v1033
  %v1052 = vpop.f32.mrf.mxu0
  %v1053 = vadd.f32 %v842, %v1052
  %1054 = vdwg.mxu0
  %v1055 = vxor.u32 %v1053, 2147483648
  %v1056 = vmul.f32 %v1055, 1.442695
  %v1057 = vpow.pop %v1056
  %v1058 = vadd.f32 %v1057, 1.0
  %v1059 = vrcp.pop %v1058
  %v1060 = vmul.f32 %v1058, %v1059
  %v1061 = vsub.f32 1.0, %v1060
  %v1062 = vmul.f32 %v1059, %v1061
  %v1063 = vadd.f32 %v1059, %v1062
  %vm1064 = vweird.f32 %v1058
  %vm1065 = vweird.f32 %v1059
  %vm1066 = vmor %vm1064, %vm1065
  %v1067 = vsel %vm1066, %v1059, %v1063
  %v1068 = vand.u32 2147483647, %v1058
  %vm1069 = vcmp.eq.f32.partialorder %v1068, 8.507059e+37
  %v1070 = vand.u32 %v1058, 2147483648
  %v1071 = vor.u32 1.1754944e-38, %v1070
  %v1072 = vsel %vm1069, %v1071, %v1067
  %v1073 = vmul.f32 1.0, %v1072
  %v1074 = vtanh.pop %v1053
  %v1075 = vmul.f32 %v1073, %v1023
  %1077 = vrot.lane.b32.xlu0 %v1074, 32
  %v1078 = vpop.permute.xlu0 %1077
  %v1080 = vmul.f32 %v1073, %v1078
  %1082 = vrot.lane.b32.xlu0 %v1080, 32
  %v1083 = vpop.permute.xlu0 %1082
  %v1085 = vadd.f32 %v1075, %v1083
  %v1086 = vtanh.pop %v1085
  %1088 = vrot.lane.b32.xlu0 %v1086, 32
  %v1089 = vpop.permute.xlu0 %1088
  %v1091 = vmul.f32 %v1073, %v1089
  %1093 = vrot.lane.b32.xlu0 %v1091, 64
  %v1094 = vpop.permute.xlu0 %1093
  %v1095 = vsel %vm129, %v1094, 0
  %1097 = vmatpush.msra.mxu0 0.0
  %1098 = vmatpush.msra.mxu0 0.0
  %1099 = vmatpush.msra.mxu0 0.0
  %1100 = vmatpush.msra.mxu0 0.0
  %1101 = vmatpush.msra.mxu0 0.0
  %1102 = vmatpush.msra.mxu0 0.0
  %1103 = vmatpush.msra.mxu0 0.0
  %1104 = vmatpush.msra.mxu0 0.0
  %1105 = vmatpush.msra.mxu0 0.0
  %1106 = vmatpush.msra.mxu0 0.0
  %1107 = vmatpush.msra.mxu0 0.0
  %1108 = vmatpush.msra.mxu0 0.0
  %1109 = vmatpush.msra.mxu0 %v811
  %1110 = vmatpush.msra.mxu0 %v810
  %1111 = vmatpush.msra.mxu0 %v809
  %1112 = vmatpush.msra.mxu0 %v808
  %1113 = vmatmul.f32.gmra.mxu0 %v1095
  %v1114 = vpop.f32.mrf.mxu0
  %v1115 = vadd.f32 %v842, %v1114
  %1116 = vdwg.mxu0
  %v1117 = vxor.u32 %v1115, 2147483648
  %v1118 = vmul.f32 %v1117, 1.442695
  %v1119 = vpow.pop %v1118
  %v1120 = vadd.f32 %v1119, 1.0
  %v1121 = vrcp.pop %v1120
  %v1122 = vmul.f32 %v1120, %v1121
  %v1123 = vsub.f32 1.0, %v1122
  %v1124 = vmul.f32 %v1121, %v1123
  %v1125 = vadd.f32 %v1121, %v1124
  %vm1126 = vweird.f32 %v1120
  %vm1127 = vweird.f32 %v1121
  %vm1128 = vmor %vm1126, %vm1127
  %v1129 = vsel %vm1128, %v1121, %v1125
  %v1130 = vand.u32 2147483647, %v1120
  %vm1131 = vcmp.eq.f32.partialorder %v1130, 8.507059e+37
  %v1132 = vand.u32 %v1120, 2147483648
  %v1133 = vor.u32 1.1754944e-38, %v1132
  %v1134 = vsel %vm1131, %v1133, %v1129
  %v1135 = vmul.f32 1.0, %v1134
  %v1136 = vtanh.pop %v1115
  %v1137 = vmul.f32 %v1135, %v1085
  %1139 = vrot.lane.b32.xlu0 %v1136, 32
  %v1140 = vpop.permute.xlu0 %1139
  %v1142 = vmul.f32 %v1135, %v1140
  %1144 = vrot.lane.b32.xlu0 %v1142, 32
  %v1145 = vpop.permute.xlu0 %1144
  %v1147 = vadd.f32 %v1137, %v1145
  %v1148 = vtanh.pop %v1147
  %1150 = vrot.lane.b32.xlu0 %v1148, 32
  %v1151 = vpop.permute.xlu0 %1150
  %v1153 = vmul.f32 %v1135, %v1151
  %1155 = vrot.lane.b32.xlu0 %v1153, 64
  %v1156 = vpop.permute.xlu0 %1155
  %v1157 = vsel %vm129, %v1156, 0
  %1159 = vmatpush.msra.mxu0 0.0
  %1160 = vmatpush.msra.mxu0 0.0
  %1161 = vmatpush.msra.mxu0 0.0
  %1162 = vmatpush.msra.mxu0 0.0
  %1163 = vmatpush.msra.mxu0 0.0
  %1164 = vmatpush.msra.mxu0 0.0
  %1165 = vmatpush.msra.mxu0 0.0
  %1166 = vmatpush.msra.mxu0 0.0
  %1167 = vmatpush.msra.mxu0 0.0
  %1168 = vmatpush.msra.mxu0 0.0
  %1169 = vmatpush.msra.mxu0 0.0
  %1170 = vmatpush.msra.mxu0 0.0
  %1171 = vmatpush.msra.mxu0 %v811
  %1172 = vmatpush.msra.mxu0 %v810
  %1173 = vmatpush.msra.mxu0 %v809
  %1174 = vmatpush.msra.mxu0 %v808
  %1175 = vmatmul.f32.gmra.mxu0 %v1157
  %v1176 = vpop.f32.mrf.mxu0
  %v1177 = vadd.f32 %v842, %v1176
  %1178 = vdwg.mxu0
  %v1179 = vxor.u32 %v1177, 2147483648
  %v1180 = vmul.f32 %v1179, 1.442695
  %v1181 = vpow.pop %v1180
  %v1182 = vadd.f32 %v1181, 1.0
  %v1183 = vrcp.pop %v1182
  %v1184 = vmul.f32 %v1182, %v1183
  %v1185 = vsub.f32 1.0, %v1184
  %v1186 = vmul.f32 %v1183, %v1185
  %v1187 = vadd.f32 %v1183, %v1186
  %vm1188 = vweird.f32 %v1182
  %vm1189 = vweird.f32 %v1183
  %vm1190 = vmor %vm1188, %vm1189
  %v1191 = vsel %vm1190, %v1183, %v1187
  %v1192 = vand.u32 2147483647, %v1182
  %vm1193 = vcmp.eq.f32.partialorder %v1192, 8.507059e+37
  %v1194 = vand.u32 %v1182, 2147483648
  %v1195 = vor.u32 1.1754944e-38, %v1194
  %v1196 = vsel %vm1193, %v1195, %v1191
  %v1197 = vmul.f32 1.0, %v1196
  %v1198 = vtanh.pop %v1177
  %v1199 = vmul.f32 %v1197, %v1147
  %1201 = vrot.lane.b32.xlu0 %v1198, 32
  %v1202 = vpop.permute.xlu0 %1201
  %v1204 = vmul.f32 %v1197, %v1202
  %1206 = vrot.lane.b32.xlu0 %v1204, 32
  %v1207 = vpop.permute.xlu0 %1206
  %v1209 = vadd.f32 %v1199, %v1207
  %v1210 = vtanh.pop %v1209
  %1212 = vrot.lane.b32.xlu0 %v1210, 32
  %v1213 = vpop.permute.xlu0 %1212
  %v1215 = vmul.f32 %v1197, %v1213
  %v1216 = vperm.slane %v816, 0
  %1219 = vrot.lane.b32.xlu0 %v1215, 64
  %v1220 = vpop.permute.xlu0 %1219
  %v1221 = vsel %vm129, %v1220, 0
  %1223 = vmatpush.msra.mxu0 0.0
  %1224 = vmatpush.msra.mxu0 0.0
  %1225 = vmatpush.msra.mxu0 0.0
  %1226 = vmatpush.msra.mxu0 0.0
  %1227 = vmatpush.msra.mxu0 0.0
  %1228 = vmatpush.msra.mxu0 0.0
  %1229 = vmatpush.msra.mxu0 0.0
  %1230 = vmatpush.msra.mxu0 0.0
  %1231 = vmatpush.msra.mxu0 0.0
  %1232 = vmatpush.msra.mxu0 0.0
  %1233 = vmatpush.msra.mxu0 0.0
  %1234 = vmatpush.msra.mxu0 0.0
  %1235 = vmatpush.msra.mxu0 %v766
  %1236 = vmatpush.msra.mxu0 %v765
  %1237 = vmatpush.msra.mxu0 %v764
  %1238 = vmatpush.msra.mxu0 %v763
  %1239 = vmatmul.f32.gmra.mxu0 %v909
  %v1240 = vpop.f32.mrf.mxu0
  %v1241 = vadd.f32 %v1216, %v1240
  %1242 = vmatmul.f32.gmra.mxu0 %v971
  %v1243 = vpop.f32.mrf.mxu0
  %v1244 = vadd.f32 %v1216, %v1243
  %1245 = vmatmul.f32.gmra.mxu0 %v1033
  %v1246 = vpop.f32.mrf.mxu0
  %v1247 = vadd.f32 %v1216, %v1246
  %1248 = vmatmul.f32.gmra.mxu0 %v1095
  %v1249 = vpop.f32.mrf.mxu0
  %v1250 = vadd.f32 %v1216, %v1249
  %1251 = vmatmul.f32.gmra.mxu0 %v1157
  %v1252 = vpop.f32.mrf.mxu0
  %v1253 = vadd.f32 %v1216, %v1252
  %1254 = vmatmul.f32.gmra.mxu0 %v1221
  %v1255 = vpop.f32.mrf.mxu0
  %v1256 = vadd.f32 %v1216, %v1255
  %1257 = vdwg.mxu0
  %1258 = vst.msk [vmem:[%s9] sm:$0xff] %vm47, %v1241
  %1259 = vst.msk [vmem:[%s9 + $0x8] sm:$0xff] %vm47, %v1244
  %1260 = vst.msk [vmem:[%s9 + $0x10] sm:$0xff] %vm47, %v1247
  %1261 = vst.msk [vmem:[%s9 + $0x18] sm:$0xff] %vm47, %v1250
  %1262 = vst.msk [vmem:[%s9 + $0x20] sm:$0xff] %vm47, %v1253
  %1263 = vst.msk [vmem:[%s9 + $0x28] sm:$0xff] %vm47, %v1256
  // Predicated region
  $region38: #{seq2seq_forward.1} parent=0 // pred_check
    _
  $region39: #{seq2seq_forward.1} parent=0 // pred_check_branch
    %1265 = sbr.rel (0) target = $region41
  $region40: #{seq2seq_forward.1} parent=0 // pred_region
    _
  $region41: #{seq2seq_forward.1} parent=0 // pred_fallthru
    _
  // Predicated region
  $region42: #{seq2seq_forward.1} parent=0 // pred_check
    _
  $region43: #{seq2seq_forward.1} parent=0 // pred_check_branch
    %1267 = sbr.rel (0) target = $region45
  $region44: #{seq2seq_forward.1} parent=0 // pred_region
    _
  $region45: #{seq2seq_forward.1} parent=0 // pred_fallthru
    _

</llo_original>
